<compile_context>
chip_gen: v5e
topology: v5e:2x2
jax: 0.10.0
libtpu: 0.0.40
codegen_flags: <defaults>
</compile_context>

<pallas_src>
import functools

import jax
import jax.numpy as jnp
import numpy as np
from jax.experimental import pallas as pl
from jax.experimental.pallas import tpu as pltpu

LN_EPS = 1e-5


def _round_up(x, m):
    return (x + m - 1) // m * m


def ngram_wavenet_kernel(
    tok_ref,                           # (bt, 8)   int32 token ids
    rep_ref, vmod_ref,                 # (8, 8V)   f32 time-broadcast matrix, (1, 8V) f32 vocab iota
    wt1_ref,                           # (8V, 4H)  f32 fused embedding + level-1 gather table
    s1_ref, g1_ref, b1_ref,            # (4H, 4H), (1, 4H), (1, 4H)
    w2_ref, s2_ref, g2_ref, b2_ref,    # (4H, 2H), (2H, 2H), (1, 2H), (1, 2H)
    w3_ref, s3_ref, g3_ref, b3_ref,    # (2H, H),  (H, H),   (1, H),  (1, H)
    w4_ref, b4_ref,                    # (H, Vp), (1, Vp)
    out_ref,                           # (bt, Vp)
):
    f32 = jnp.float32

    # ---- fused embedding gather + level-1 linear (one-hot MXU matmul) ----
    tok_f = tok_ref[...].astype(f32)                                        # (bt, 8)
    # broadcast token t across its V-wide lane segment (exact: 0/1 matrix, ints <= V-1)
    tok_b = jnp.dot(tok_f, rep_ref[...], preferred_element_type=f32)        # (bt, 8V)
    onehot = (jnp.abs(tok_b - vmod_ref[...]) < 0.5).astype(f32)             # (bt, 8V), exact
    z1 = jnp.dot(onehot, wt1_ref[...], preferred_element_type=f32)          # (bt, 4H)

    def ln_tanh(z, s_ref, g_ref, b_ref):
        # Per-H-segment LayerNorm via block-diagonal averaging matmuls (MXU is idle),
        # keeping the VPU/EUP work lane-dense.  Biased variance, as in PyTorch.
        s = s_ref[...]
        m = jnp.dot(z, s, preferred_element_type=f32)                       # segment mean
        q = jnp.dot(z * z, s, preferred_element_type=f32)                   # segment E[x^2]
        var = jnp.maximum(q - m * m, 0.0)
        inv = jax.lax.rsqrt(var + LN_EPS)
        return jnp.tanh((z - m) * inv * g_ref[...] + b_ref[...])

    # Level 1 (4 time positions lane-packed).  Dropout1d is identity in eval mode.
    # TODO(synk): train-mode Dropout1d (channel dropout) is not implemented.
    h1 = ln_tanh(z1, s1_ref, g1_ref, b1_ref)                                # (bt, 4H)

    # Level 2: pair-concat expressed as one block-diagonal matmul.
    z2 = jnp.dot(h1, w2_ref[...], preferred_element_type=f32)               # (bt, 2H)
    h2 = ln_tanh(z2, s2_ref, g2_ref, b2_ref)

    # Level 3: final pair-concat -> single position.
    z3 = jnp.dot(h2, w3_ref[...], preferred_element_type=f32)               # (bt, H)
    h3 = ln_tanh(z3, s3_ref, g3_ref, b3_ref)

    # Output head: lane-dense (Vp multiple of 128) unmasked store.
    logits = jnp.dot(h3, w4_ref[...], preferred_element_type=f32) + b4_ref[...]
    out_ref[...] = logits.astype(out_ref.dtype)


def init_params(key, vocab_size, n_embed, n_hidden, embed_weight_data=0.1):
    ks = jax.random.split(key, 6)
    H, E, V = n_hidden, n_embed, vocab_size
    params = {
        # Embedding ~ N(0,1) * embed_weight_data (mirrors emb.weight.data *= hparam)
        "emb": jax.random.normal(ks[0], (V, E), jnp.float32) * embed_weight_data,
        # Linear weights stored PyTorch-style (out, in).
        "w1": jax.random.normal(ks[1], (H, 2 * E), jnp.float32) / np.sqrt(2 * E),
        "w2": jax.random.normal(ks[2], (H, 2 * H), jnp.float32) / np.sqrt(2 * H),
        "w3": jax.random.normal(ks[3], (H, 2 * H), jnp.float32) / np.sqrt(2 * H),
        # Final layer: weight scaled by 0.1 (mirrors model[-1].weight *= 0.1).
        "w4": jax.random.normal(ks[4], (V, H), jnp.float32) / np.sqrt(H) * 0.1,
        "b4": jax.random.normal(ks[5], (V,), jnp.float32) * 0.01,
        # LayerNorms: default init.
        "g1": jnp.ones((H,), jnp.float32), "bn1": jnp.zeros((H,), jnp.float32),
        "g2": jnp.ones((H,), jnp.float32), "bn2": jnp.zeros((H,), jnp.float32),
        "g3": jnp.ones((H,), jnp.float32), "bn3": jnp.zeros((H,), jnp.float32),
    }
    return params


@functools.partial(
    jax.jit,
    static_argnames=("vocab_size", "n_embed", "n_hidden", "b_tile", "out_dtype"))
def ngram_wavenet_forward(tokens, params, *, vocab_size, n_embed, n_hidden,
                          b_tile=None, out_dtype=jnp.float32):
    B, T = tokens.shape
    assert T == 8, "this kernel instantiates the 3-level tree (block_size == 8)"
    E, H, V = n_embed, n_hidden, vocab_size
    f32 = jnp.float32

    # ---- batch tiling: >= 2 grid steps when possible (v7x: 2 TCs), capped at 4096
    # rows so per-step VMEM stays well inside v7x's 64 MiB. ----
    if b_tile is None:
        b8 = _round_up(B, 8)
        b_tile = max(8, min(4096, _round_up(pl.cdiv(b8, 2), 8)))
    bt = max(8, _round_up(b_tile, 8))
    B_pad = _round_up(max(B, bt), bt)
    nb = B_pad // bt

    tok = tokens.astype(jnp.int32)
    if B_pad != B:
        tok = jnp.pad(tok, ((0, B_pad - B), (0, 0)))   # pad rows with token id 0

    # ---- fold Embedding + level-1 Linear into a (8V, 4H) gather table ----
    emb = params["emb"].astype(f32)                     # (V, E)
    w1 = params["w1"].astype(f32)                       # (H, 2E)
    tblA = jnp.dot(emb, w1[:, :E].T)                    # (V, H)  even-time contribution
    tblB = jnp.dot(emb, w1[:, E:].T)                    # (V, H)  odd-time contribution
    blocks = []
    for t in range(T):                                  # time t -> pair p = t // 2
        row = [jnp.zeros((V, H), f32)] * 4
        row[t // 2] = tblA if t % 2 == 0 else tblB
        blocks.append(jnp.concatenate(row, axis=1))
    wt1 = jnp.concatenate(blocks, axis=0)               # (8V, 4H)

    # time-broadcast matrix and per-lane vocab index for the in-kernel one-hot
    rep = jnp.kron(jnp.eye(T, dtype=f32), jnp.ones((1, V), f32))          # (8, 8V)
    vmod = jnp.tile(jnp.arange(V, dtype=f32), T).reshape(1, T * V)        # (1, 8V)

    # block-diagonal segment-averaging matrices for lane-packed LayerNorm
    def seg_avg(n_seg):
        return jnp.kron(jnp.eye(n_seg, dtype=f32), jnp.full((H, H), 1.0 / H, f32))
    s1, s2, s3 = seg_avg(4), seg_avg(2), seg_avg(1)

    # levels 2/3: pair-concat as block-diagonal / stacked weights, (in, out) layout
    w2big = jnp.kron(jnp.eye(2, dtype=f32), params["w2"].T.astype(f32))   # (4H, 2H)
    w3t = params["w3"].T.astype(f32)                                      # (2H, H)

    # lane-dense padded output head
    Vp = _round_up(max(V, 128), 128)
    w4p = jnp.pad(params["w4"].T.astype(f32), ((0, 0), (0, Vp - V)))      # (H, Vp)
    b4p = jnp.pad(params["b4"].astype(f32), (0, Vp - V)).reshape(1, Vp)   # (1, Vp)

    # LN affine params, tiled per lane segment
    g1p = jnp.tile(params["g1"].astype(f32), 4).reshape(1, 4 * H)
    b1p = jnp.tile(params["bn1"].astype(f32), 4).reshape(1, 4 * H)
    g2p = jnp.tile(params["g2"].astype(f32), 2).reshape(1, 2 * H)
    b2p = jnp.tile(params["bn2"].astype(f32), 2).reshape(1, 2 * H)
    g3p = params["g3"].astype(f32).reshape(1, H)
    b3p = params["bn3"].astype(f32).reshape(1, H)

    weights = (rep, vmod, wt1,
               s1, g1p, b1p,
               w2big, s2, g2p, b2p,
               w3t, s3, g3p, b3p,
               w4p, b4p)

    def _resident(a):  # same block every grid step -> stays VMEM-resident
        return pl.BlockSpec(a.shape, lambda i: (0,) * a.ndim)

    # cost estimate (per padded row) for XLA's scheduler
    macs_row = (T * T * V) + (T * V) * (4 * H) + 2 * (4 * H) ** 2 + (4 * H) * (2 * H) \
               + 2 * (2 * H) ** 2 + (2 * H) * H + 2 * H * H + H * Vp
    weight_bytes = sum(int(np.prod(a.shape)) * 4 for a in weights)
    out_itemsize = jnp.dtype(out_dtype).itemsize
    cost = pl.CostEstimate(
        flops=2 * macs_row * B_pad,
        transcendentals=8 * H * B_pad,
        bytes_accessed=B_pad * T * 4 + B_pad * Vp * out_itemsize + weight_bytes)

    # scoped-VMEM limit: ~6 KiB/row of double-buffered I/O + temporaries, plus weights
    vmem_limit = int(min(96 * 2**20, max(32 * 2**20, 8 * 2**20 + 6 * 1024 * bt)))

    out = pl.pallas_call(
        ngram_wavenet_kernel,
        out_shape=jax.ShapeDtypeStruct((B_pad, Vp), out_dtype),
        grid=(nb,),
        in_specs=[pl.BlockSpec((bt, T), lambda i: (i, 0))]
                 + [_resident(a) for a in weights],
        out_specs=pl.BlockSpec((bt, Vp), lambda i: (i, 0)),
        compiler_params=pltpu.CompilerParams(
            dimension_semantics=("parallel",),
            vmem_limit_bytes=vmem_limit),
        cost_estimate=cost,
    )(tok, *weights)

    if B_pad == B and Vp == V:
        return out
    return out[:B, :V]


def reference_forward(tokens, params, *, vocab_size, n_embed, n_hidden):
    """Pure-JAX f32 reference mirroring the PyTorch module (eval mode)."""
    B, T = tokens.shape
    H = n_hidden

    def ln(h, g, b):
        mu = jnp.mean(h, -1, keepdims=True)
        var = jnp.mean((h - mu) ** 2, -1, keepdims=True)
        return (h - mu) / jnp.sqrt(var + LN_EPS) * g + b

    x = jnp.take(params["emb"], tokens, axis=0)              # (B, 8, E)
    x = x.reshape(B, T // 2, 2 * n_embed)
    x = jnp.tanh(ln(x @ params["w1"].T, params["g1"], params["bn1"]))
    x = x.reshape(B, T // 4, 2 * H)
    x = jnp.tanh(ln(x @ params["w2"].T, params["g2"], params["bn2"]))
    x = x.reshape(B, T // 8, 2 * H)
    if x.shape[1] == 1:
        x = x[:, 0, :]
    x = jnp.tanh(ln(x @ params["w3"].T, params["g3"], params["bn3"]))
    return x @ params["w4"].T + params["b4"]


if __name__ == "__main__":
    vocab_size, n_embed, n_hidden, block_size, batch = 32, 16, 32, 8, 40

    key = jax.random.PRNGKey(0)
    k_tok, k_par = jax.random.split(key)
    tokens = jax.random.randint(k_tok, (batch, block_size), 0, vocab_size, dtype=jnp.int32)
    params = init_params(k_par, vocab_size, n_embed, n_hidden, embed_weight_data=0.1)

    ref = reference_forward(
        tokens, params, vocab_size=vocab_size, n_embed=n_embed, n_hidden=n_hidden)
    ref = np.asarray(jax.block_until_ready(ref))

    # Default tile (2 grid steps + row padding) and a small tile (multi-step grid).
    for b_tile in (None, 16):
        out = ngram_wavenet_forward(
            tokens, params, vocab_size=vocab_size, n_embed=n_embed,
            n_hidden=n_hidden, b_tile=b_tile)
        out = np.asarray(jax.block_until_ready(out))
        np.testing.assert_allclose(out, ref, rtol=1e-2, atol=1e-2)

    # bf16 logits path (halves output HBM writeback), looser tolerance.
    out_bf16 = ngram_wavenet_forward(
        tokens, params, vocab_size=vocab_size, n_embed=n_embed, n_hidden=n_hidden,
        out_dtype=jnp.bfloat16)
    out_bf16 = np.asarray(jax.block_until_ready(out_bf16)).astype(np.float32)
    np.testing.assert_allclose(out_bf16, ref, rtol=2e-2, atol=2e-2)

    print("KERNEL_OK")
</pallas_src>

<mosaic_0001>
module attributes {stable_mosaic.version = 11 : i64} {
  func.func @ngram_wavenet_kernel(%arg0: i32, %arg1: memref<24x8xi32, #tpu.memory_space<vmem>>, %arg2: memref<8x256xf32, #tpu.memory_space<vmem>>, %arg3: memref<1x256xf32, #tpu.memory_space<vmem>>, %arg4: memref<256x128xf32, #tpu.memory_space<vmem>>, %arg5: memref<128x128xf32, #tpu.memory_space<vmem>>, %arg6: memref<1x128xf32, #tpu.memory_space<vmem>>, %arg7: memref<1x128xf32, #tpu.memory_space<vmem>>, %arg8: memref<128x64xf32, #tpu.memory_space<vmem>>, %arg9: memref<64x64xf32, #tpu.memory_space<vmem>>, %arg10: memref<1x64xf32, #tpu.memory_space<vmem>>, %arg11: memref<1x64xf32, #tpu.memory_space<vmem>>, %arg12: memref<64x32xf32, #tpu.memory_space<vmem>>, %arg13: memref<32x32xf32, #tpu.memory_space<vmem>>, %arg14: memref<1x32xf32, #tpu.memory_space<vmem>>, %arg15: memref<1x32xf32, #tpu.memory_space<vmem>>, %arg16: memref<32x128xf32, #tpu.memory_space<vmem>>, %arg17: memref<1x128xf32, #tpu.memory_space<vmem>>, %arg18: memref<24x128xf32, #tpu.memory_space<vmem>>) attributes {dimension_semantics = [#tpu.dimension_semantics<parallel>], iteration_bounds = array<i64: 2>, scalar_prefetch = 0 : i64, scratch_operands = 0 : i64, tpu.core_type = #tpu.core_type<tc>, window_params = [{transform_indices = @transform_0, window_bounds = array<i64: 24, 8>}, {pipeline_mode = #tpu.pipeline_mode<synchronous>, transform_indices = @transform_1, window_bounds = array<i64: 8, 256>}, {pipeline_mode = #tpu.pipeline_mode<synchronous>, transform_indices = @transform_2, window_bounds = array<i64: 1, 256>}, {pipeline_mode = #tpu.pipeline_mode<synchronous>, transform_indices = @transform_3, window_bounds = array<i64: 256, 128>}, {pipeline_mode = #tpu.pipeline_mode<synchronous>, transform_indices = @transform_4, window_bounds = array<i64: 128, 128>}, {pipeline_mode = #tpu.pipeline_mode<synchronous>, transform_indices = @transform_5, window_bounds = array<i64: 1, 128>}, {pipeline_mode = #tpu.pipeline_mode<synchronous>, transform_indices = @transform_6, window_bounds = array<i64: 1, 128>}, {pipeline_mode = #tpu.pipeline_mode<synchronous>, transform_indices = @transform_7, window_bounds = array<i64: 128, 64>}, {pipeline_mode = #tpu.pipeline_mode<synchronous>, transform_indices = @transform_8, window_bounds = array<i64: 64, 64>}, {pipeline_mode = #tpu.pipeline_mode<synchronous>, transform_indices = @transform_9, window_bounds = array<i64: 1, 64>}, {pipeline_mode = #tpu.pipeline_mode<synchronous>, transform_indices = @transform_10, window_bounds = array<i64: 1, 64>}, {pipeline_mode = #tpu.pipeline_mode<synchronous>, transform_indices = @transform_11, window_bounds = array<i64: 64, 32>}, {pipeline_mode = #tpu.pipeline_mode<synchronous>, transform_indices = @transform_12, window_bounds = array<i64: 32, 32>}, {pipeline_mode = #tpu.pipeline_mode<synchronous>, transform_indices = @transform_13, window_bounds = array<i64: 1, 32>}, {pipeline_mode = #tpu.pipeline_mode<synchronous>, transform_indices = @transform_14, window_bounds = array<i64: 1, 32>}, {pipeline_mode = #tpu.pipeline_mode<synchronous>, transform_indices = @transform_15, window_bounds = array<i64: 32, 128>}, {pipeline_mode = #tpu.pipeline_mode<synchronous>, transform_indices = @transform_16, window_bounds = array<i64: 1, 128>}, {transform_indices = @transform_17, window_bounds = array<i64: 24, 128>}]} {
    %c0 = arith.constant 0 : index
    %c0_0 = arith.constant 0 : index
    %0 = vector.load %arg1[%c0, %c0_0] : memref<24x8xi32, #tpu.memory_space<vmem>>, vector<24x8xi32>
    %1 = arith.sitofp %0 : vector<24x8xi32> to vector<24x8xf32>
    %c0_1 = arith.constant 0 : index
    %c0_2 = arith.constant 0 : index
    %2 = vector.load %arg2[%c0_1, %c0_2] : memref<8x256xf32, #tpu.memory_space<vmem>>, vector<8x256xf32>
    %cst = arith.constant dense<0.000000e+00> : vector<24x256xf32>
    %3 = tpu.matmul %1, %2, %cst {dimension_numbers = #tpu.dot_dimension_numbers<[1], [0], [0], [1], [0, 0, 1, 1], [], []>} : vector<24x8xf32>, vector<8x256xf32>, vector<24x256xf32> -> vector<24x256xf32>
    %c0_3 = arith.constant 0 : index
    %c0_4 = arith.constant 0 : index
    %4 = vector.load %arg3[%c0_3, %c0_4] : memref<1x256xf32, #tpu.memory_space<vmem>>, vector<1x256xf32>
    %5 = vector.broadcast %4 : vector<1x256xf32> to vector<24x256xf32>
    %6 = arith.subf %3, %5 : vector<24x256xf32>
    %7 = math.absf %6 : vector<24x256xf32>
    %cst_5 = arith.constant 5.000000e-01 : f32
    %8 = vector.broadcast %cst_5 : f32 to vector<24x256xf32>
    %9 = arith.cmpf olt, %7, %8 : vector<24x256xf32>
    %10 = arith.extui %9 : vector<24x256xi1> to vector<24x256xi32>
    %11 = arith.sitofp %10 : vector<24x256xi32> to vector<24x256xf32>
    %c0_6 = arith.constant 0 : index
    %c0_7 = arith.constant 0 : index
    %12 = vector.load %arg4[%c0_6, %c0_7] : memref<256x128xf32, #tpu.memory_space<vmem>>, vector<256x128xf32>
    %cst_8 = arith.constant dense<0.000000e+00> : vector<24x128xf32>
    %13 = tpu.matmul %11, %12, %cst_8 {dimension_numbers = #tpu.dot_dimension_numbers<[1], [0], [0], [1], [0, 0, 1, 1], [], []>} : vector<24x256xf32>, vector<256x128xf32>, vector<24x128xf32> -> vector<24x128xf32>
    %c0_9 = arith.constant 0 : index
    %c0_10 = arith.constant 0 : index
    %14 = vector.load %arg5[%c0_9, %c0_10] : memref<128x128xf32, #tpu.memory_space<vmem>>, vector<128x128xf32>
    %cst_11 = arith.constant dense<0.000000e+00> : vector<24x128xf32>
    %15 = tpu.matmul %13, %14, %cst_11 {dimension_numbers = #tpu.dot_dimension_numbers<[1], [0], [0], [1], [0, 0, 1, 1], [], []>} : vector<24x128xf32>, vector<128x128xf32>, vector<24x128xf32> -> vector<24x128xf32>
    %16 = arith.mulf %13, %13 : vector<24x128xf32>
    %cst_12 = arith.constant dense<0.000000e+00> : vector<24x128xf32>
    %17 = tpu.matmul %16, %14, %cst_12 {dimension_numbers = #tpu.dot_dimension_numbers<[1], [0], [0], [1], [0, 0, 1, 1], [], []>} : vector<24x128xf32>, vector<128x128xf32>, vector<24x128xf32> -> vector<24x128xf32>
    %18 = arith.mulf %15, %15 : vector<24x128xf32>
    %19 = arith.subf %17, %18 : vector<24x128xf32>
    %cst_13 = arith.constant 0.000000e+00 : f32
    %20 = vector.broadcast %cst_13 : f32 to vector<24x128xf32>
    %21 = arith.maximumf %19, %20 : vector<24x128xf32>
    %cst_14 = arith.constant 9.99999974E-6 : f32
    %22 = vector.broadcast %cst_14 : f32 to vector<24x128xf32>
    %23 = arith.addf %21, %22 : vector<24x128xf32>
    %24 = math.rsqrt %23 : vector<24x128xf32>
    %25 = arith.subf %13, %15 : vector<24x128xf32>
    %26 = arith.mulf %25, %24 : vector<24x128xf32>
    %c0_15 = arith.constant 0 : index
    %c0_16 = arith.constant 0 : index
    %27 = vector.load %arg6[%c0_15, %c0_16] : memref<1x128xf32, #tpu.memory_space<vmem>>, vector<1x128xf32>
    %28 = vector.broadcast %27 : vector<1x128xf32> to vector<24x128xf32>
    %29 = arith.mulf %26, %28 : vector<24x128xf32>
    %c0_17 = arith.constant 0 : index
    %c0_18 = arith.constant 0 : index
    %30 = vector.load %arg7[%c0_17, %c0_18] : memref<1x128xf32, #tpu.memory_space<vmem>>, vector<1x128xf32>
    %31 = vector.broadcast %30 : vector<1x128xf32> to vector<24x128xf32>
    %32 = arith.addf %29, %31 : vector<24x128xf32>
    %33 = math.tanh %32 : vector<24x128xf32>
    %c0_19 = arith.constant 0 : index
    %c0_20 = arith.constant 0 : index
    %34 = vector.load %arg8[%c0_19, %c0_20] : memref<128x64xf32, #tpu.memory_space<vmem>>, vector<128x64xf32>
    %cst_21 = arith.constant dense<0.000000e+00> : vector<24x64xf32>
    %35 = tpu.matmul %33, %34, %cst_21 {dimension_numbers = #tpu.dot_dimension_numbers<[1], [0], [0], [1], [0, 0, 1, 1], [], []>} : vector<24x128xf32>, vector<128x64xf32>, vector<24x64xf32> -> vector<24x64xf32>
    %c0_22 = arith.constant 0 : index
    %c0_23 = arith.constant 0 : index
    %36 = vector.load %arg9[%c0_22, %c0_23] : memref<64x64xf32, #tpu.memory_space<vmem>>, vector<64x64xf32>
    %cst_24 = arith.constant dense<0.000000e+00> : vector<24x64xf32>
    %37 = tpu.matmul %35, %36, %cst_24 {dimension_numbers = #tpu.dot_dimension_numbers<[1], [0], [0], [1], [0, 0, 1, 1], [], []>} : vector<24x64xf32>, vector<64x64xf32>, vector<24x64xf32> -> vector<24x64xf32>
    %38 = arith.mulf %35, %35 : vector<24x64xf32>
    %cst_25 = arith.constant dense<0.000000e+00> : vector<24x64xf32>
    %39 = tpu.matmul %38, %36, %cst_25 {dimension_numbers = #tpu.dot_dimension_numbers<[1], [0], [0], [1], [0, 0, 1, 1], [], []>} : vector<24x64xf32>, vector<64x64xf32>, vector<24x64xf32> -> vector<24x64xf32>
    %40 = arith.mulf %37, %37 : vector<24x64xf32>
    %41 = arith.subf %39, %40 : vector<24x64xf32>
    %cst_26 = arith.constant 0.000000e+00 : f32
    %42 = vector.broadcast %cst_26 : f32 to vector<24x64xf32>
    %43 = arith.maximumf %41, %42 : vector<24x64xf32>
    %cst_27 = arith.constant 9.99999974E-6 : f32
    %44 = vector.broadcast %cst_27 : f32 to vector<24x64xf32>
    %45 = arith.addf %43, %44 : vector<24x64xf32>
    %46 = math.rsqrt %45 : vector<24x64xf32>
    %47 = arith.subf %35, %37 : vector<24x64xf32>
    %48 = arith.mulf %47, %46 : vector<24x64xf32>
    %c0_28 = arith.constant 0 : index
    %c0_29 = arith.constant 0 : index
    %49 = vector.load %arg10[%c0_28, %c0_29] : memref<1x64xf32, #tpu.memory_space<vmem>>, vector<1x64xf32>
    %50 = vector.broadcast %49 : vector<1x64xf32> to vector<24x64xf32>
    %51 = arith.mulf %48, %50 : vector<24x64xf32>
    %c0_30 = arith.constant 0 : index
    %c0_31 = arith.constant 0 : index
    %52 = vector.load %arg11[%c0_30, %c0_31] : memref<1x64xf32, #tpu.memory_space<vmem>>, vector<1x64xf32>
    %53 = vector.broadcast %52 : vector<1x64xf32> to vector<24x64xf32>
    %54 = arith.addf %51, %53 : vector<24x64xf32>
    %55 = math.tanh %54 : vector<24x64xf32>
    %c0_32 = arith.constant 0 : index
    %c0_33 = arith.constant 0 : index
    %56 = vector.load %arg12[%c0_32, %c0_33] : memref<64x32xf32, #tpu.memory_space<vmem>>, vector<64x32xf32>
    %cst_34 = arith.constant dense<0.000000e+00> : vector<24x32xf32>
    %57 = tpu.matmul %55, %56, %cst_34 {dimension_numbers = #tpu.dot_dimension_numbers<[1], [0], [0], [1], [0, 0, 1, 1], [], []>} : vector<24x64xf32>, vector<64x32xf32>, vector<24x32xf32> -> vector<24x32xf32>
    %c0_35 = arith.constant 0 : index
    %c0_36 = arith.constant 0 : index
    %58 = vector.load %arg13[%c0_35, %c0_36] : memref<32x32xf32, #tpu.memory_space<vmem>>, vector<32x32xf32>
    %cst_37 = arith.constant dense<0.000000e+00> : vector<24x32xf32>
    %59 = tpu.matmul %57, %58, %cst_37 {dimension_numbers = #tpu.dot_dimension_numbers<[1], [0], [0], [1], [0, 0, 1, 1], [], []>} : vector<24x32xf32>, vector<32x32xf32>, vector<24x32xf32> -> vector<24x32xf32>
    %60 = arith.mulf %57, %57 : vector<24x32xf32>
    %cst_38 = arith.constant dense<0.000000e+00> : vector<24x32xf32>
    %61 = tpu.matmul %60, %58, %cst_38 {dimension_numbers = #tpu.dot_dimension_numbers<[1], [0], [0], [1], [0, 0, 1, 1], [], []>} : vector<24x32xf32>, vector<32x32xf32>, vector<24x32xf32> -> vector<24x32xf32>
    %62 = arith.mulf %59, %59 : vector<24x32xf32>
    %63 = arith.subf %61, %62 : vector<24x32xf32>
    %cst_39 = arith.constant 0.000000e+00 : f32
    %64 = vector.broadcast %cst_39 : f32 to vector<24x32xf32>
    %65 = arith.maximumf %63, %64 : vector<24x32xf32>
    %cst_40 = arith.constant 9.99999974E-6 : f32
    %66 = vector.broadcast %cst_40 : f32 to vector<24x32xf32>
    %67 = arith.addf %65, %66 : vector<24x32xf32>
    %68 = math.rsqrt %67 : vector<24x32xf32>
    %69 = arith.subf %57, %59 : vector<24x32xf32>
    %70 = arith.mulf %69, %68 : vector<24x32xf32>
    %c0_41 = arith.constant 0 : index
    %c0_42 = arith.constant 0 : index
    %71 = vector.load %arg14[%c0_41, %c0_42] : memref<1x32xf32, #tpu.memory_space<vmem>>, vector<1x32xf32>
    %72 = vector.broadcast %71 : vector<1x32xf32> to vector<24x32xf32>
    %73 = arith.mulf %70, %72 : vector<24x32xf32>
    %c0_43 = arith.constant 0 : index
    %c0_44 = arith.constant 0 : index
    %74 = vector.load %arg15[%c0_43, %c0_44] : memref<1x32xf32, #tpu.memory_space<vmem>>, vector<1x32xf32>
    %75 = vector.broadcast %74 : vector<1x32xf32> to vector<24x32xf32>
    %76 = arith.addf %73, %75 : vector<24x32xf32>
    %77 = math.tanh %76 : vector<24x32xf32>
    %c0_45 = arith.constant 0 : index
    %c0_46 = arith.constant 0 : index
    %78 = vector.load %arg16[%c0_45, %c0_46] : memref<32x128xf32, #tpu.memory_space<vmem>>, vector<32x128xf32>
    %cst_47 = arith.constant dense<0.000000e+00> : vector<24x128xf32>
    %79 = tpu.matmul %77, %78, %cst_47 {dimension_numbers = #tpu.dot_dimension_numbers<[1], [0], [0], [1], [0, 0, 1, 1], [], []>} : vector<24x32xf32>, vector<32x128xf32>, vector<24x128xf32> -> vector<24x128xf32>
    %c0_48 = arith.constant 0 : index
    %c0_49 = arith.constant 0 : index
    %80 = vector.load %arg17[%c0_48, %c0_49] : memref<1x128xf32, #tpu.memory_space<vmem>>, vector<1x128xf32>
    %81 = vector.broadcast %80 : vector<1x128xf32> to vector<24x128xf32>
    %82 = arith.addf %79, %81 : vector<24x128xf32>
    %c0_50 = arith.constant 0 : index
    %c0_51 = arith.constant 0 : index
    %83 = vector.load %arg18[%c0_50, %c0_51] : memref<24x128xf32, #tpu.memory_space<vmem>>, vector<24x128xf32>
    tpu.vector_store %arg18[%c0_50, %c0_51], %82 {strides = array<i32>} : memref<24x128xf32, #tpu.memory_space<vmem>>, vector<24x128xf32>,
    return
  }
  func.func @transform_0(%arg0: i32) -> (i32, i32) {
    %c0_i32 = arith.constant 0 : i32
    %c0_i32_0 = arith.constant 0 : i32
    return %arg0, %c0_i32 : i32, i32
  }
  func.func @transform_1(%arg0: i32) -> (i32, i32) {
    %c0_i32 = arith.constant 0 : i32
    %c0_i32_0 = arith.constant 0 : i32
    %c0_i32_1 = arith.constant 0 : i32
    return %c0_i32, %c0_i32_0 : i32, i32
  }
  func.func @transform_2(%arg0: i32) -> (i32, i32) {
    %c0_i32 = arith.constant 0 : i32
    %c0_i32_0 = arith.constant 0 : i32
    %c0_i32_1 = arith.constant 0 : i32
    return %c0_i32, %c0_i32_0 : i32, i32
  }
  func.func @transform_3(%arg0: i32) -> (i32, i32) {
    %c0_i32 = arith.constant 0 : i32
    %c0_i32_0 = arith.constant 0 : i32
    %c0_i32_1 = arith.constant 0 : i32
    return %c0_i32, %c0_i32_0 : i32, i32
  }
  func.func @transform_4(%arg0: i32) -> (i32, i32) {
    %c0_i32 = arith.constant 0 : i32
    %c0_i32_0 = arith.constant 0 : i32
    %c0_i32_1 = arith.constant 0 : i32
    return %c0_i32, %c0_i32_0 : i32, i32
  }
  func.func @transform_5(%arg0: i32) -> (i32, i32) {
    %c0_i32 = arith.constant 0 : i32
    %c0_i32_0 = arith.constant 0 : i32
    %c0_i32_1 = arith.constant 0 : i32
    return %c0_i32, %c0_i32_0 : i32, i32
  }
  func.func @transform_6(%arg0: i32) -> (i32, i32) {
    %c0_i32 = arith.constant 0 : i32
    %c0_i32_0 = arith.constant 0 : i32
    %c0_i32_1 = arith.constant 0 : i32
    return %c0_i32, %c0_i32_0 : i32, i32
  }
  func.func @transform_7(%arg0: i32) -> (i32, i32) {
    %c0_i32 = arith.constant 0 : i32
    %c0_i32_0 = arith.constant 0 : i32
    %c0_i32_1 = arith.constant 0 : i32
    return %c0_i32, %c0_i32_0 : i32, i32
  }
  func.func @transform_8(%arg0: i32) -> (i32, i32) {
    %c0_i32 = arith.constant 0 : i32
    %c0_i32_0 = arith.constant 0 : i32
    %c0_i32_1 = arith.constant 0 : i32
    return %c0_i32, %c0_i32_0 : i32, i32
  }
  func.func @transform_9(%arg0: i32) -> (i32, i32) {
    %c0_i32 = arith.constant 0 : i32
    %c0_i32_0 = arith.constant 0 : i32
    %c0_i32_1 = arith.constant 0 : i32
    return %c0_i32, %c0_i32_0 : i32, i32
  }
  func.func @transform_10(%arg0: i32) -> (i32, i32) {
    %c0_i32 = arith.constant 0 : i32
    %c0_i32_0 = arith.constant 0 : i32
    %c0_i32_1 = arith.constant 0 : i32
    return %c0_i32, %c0_i32_0 : i32, i32
  }
  func.func @transform_11(%arg0: i32) -> (i32, i32) {
    %c0_i32 = arith.constant 0 : i32
    %c0_i32_0 = arith.constant 0 : i32
    %c0_i32_1 = arith.constant 0 : i32
    return %c0_i32, %c0_i32_0 : i32, i32
  }
  func.func @transform_12(%arg0: i32) -> (i32, i32) {
    %c0_i32 = arith.constant 0 : i32
    %c0_i32_0 = arith.constant 0 : i32
    %c0_i32_1 = arith.constant 0 : i32
    return %c0_i32, %c0_i32_0 : i32, i32
  }
  func.func @transform_13(%arg0: i32) -> (i32, i32) {
    %c0_i32 = arith.constant 0 : i32
    %c0_i32_0 = arith.constant 0 : i32
    %c0_i32_1 = arith.constant 0 : i32
    return %c0_i32, %c0_i32_0 : i32, i32
  }
  func.func @transform_14(%arg0: i32) -> (i32, i32) {
    %c0_i32 = arith.constant 0 : i32
    %c0_i32_0 = arith.constant 0 : i32
    %c0_i32_1 = arith.constant 0 : i32
    return %c0_i32, %c0_i32_0 : i32, i32
  }
  func.func @transform_15(%arg0: i32) -> (i32, i32) {
    %c0_i32 = arith.constant 0 : i32
    %c0_i32_0 = arith.constant 0 : i32
    %c0_i32_1 = arith.constant 0 : i32
    return %c0_i32, %c0_i32_0 : i32, i32
  }
  func.func @transform_16(%arg0: i32) -> (i32, i32) {
    %c0_i32 = arith.constant 0 : i32
    %c0_i32_0 = arith.constant 0 : i32
    %c0_i32_1 = arith.constant 0 : i32
    return %c0_i32, %c0_i32_0 : i32, i32
  }
  func.func @transform_17(%arg0: i32) -> (i32, i32) {
    %c0_i32 = arith.constant 0 : i32
    %c0_i32_0 = arith.constant 0 : i32
    return %arg0, %c0_i32 : i32, i32
  }
}

</mosaic_0001>

<llo_original>
// kernel: tile.29
$region0: #{tile.29}
  %s0 = inlined_call_operand.vmem [shape: f32[8,32], index: 0, kind: input, shape index: {}]
  %s1 = inlined_call_operand.vmem [shape: f32[1,256], index: 1, kind: output, shape index: {}]
  $region1: #{tile.29} parent=0
    #allocation0 [shape = 'u8[8192]{0}', space=vmem, size = 0x2000, scoped, tag = 'scoped mem for output reshape']
    %s2 = smov 3
    %v3 = vld [vmem:[%s0] ss:$4 sm:%s2]
    %vm4 = vcmask 261120
    %5 = vst.msk [vmem:[#allocation0] ss:$8 sm:$0x3] %vm4, %v3
    %s6 = scalar_lea.vmem %s0, 3
    %s7 = smov 3
    %v8 = vld [vmem:[%s6] ss:$4 sm:%s7]
    %9 = vrot.lane.b32.xlu0 %v8, 96
    %v10 = vpop.permute.xlu0 %9
    %vm11 = vcmask 1048320
    %12 = vst.msk [vmem:[#allocation0] ss:$8 sm:$0x3] %vm11, %v10
    %s13 = scalar_lea.vmem %s0, 2
    %s14 = smov 3
    %v15 = vld [vmem:[%s13] ss:$4 sm:%s14]
    %16 = vrot.lane.b32.xlu0 %v15, 64
    %v17 = vpop.permute.xlu0 %16
    %vm18 = vcmask 785920
    %19 = vst.msk [vmem:[#allocation0] ss:$8 sm:$0x3] %vm18, %v17
    %s20 = scalar_lea.vmem %s0, 1
    %s21 = smov 3
    %v22 = vld [vmem:[%s20] ss:$4 sm:%s21]
    %23 = vrot.lane.b32.xlu0 %v22, 32
    %v24 = vpop.permute.xlu0 %23
    %vm25 = vcmask 523520
    %26 = vst.msk [vmem:[#allocation0] ss:$8 sm:$0x3] %vm25, %v24
    %s28 = ssub.s32 2, 1
    %v29 = vld [vmem:[#allocation0] sm:%s28]
    %s31 = ssub.s32 2, 1
    %32 = vst [vmem:[%s1] sm:%s31] %v29
    %s33 = scalar_lea.vmem [#allocation0], 8
    %v34 = vld [vmem:[%s33] sm:%s28]
    %s36 = ssub.s32 2, 1
    %s37 = scalar_lea.vmem %s1, 1
    %38 = vst [vmem:[%s37] sm:%s36] %v34

// kernel: tile.33
$region0: #{tile.33}
  #allocation0 [shape = 's32[1]{0}', space=sflag, size = 0x4, scoped, tag = 'scoped memory for tile.33']
  %s0 = inlined_call_operand.vmem [shape: f32[32], index: 0, kind: input, shape index: {}]
  %s1 = inlined_call_operand.vmem [shape: f32[4,32], index: 1, kind: output, shape index: {}]
  // Predicated region
  $region2: #{tile.33} parent=0 // pred_check
    _
  $region3: #{tile.33} parent=0 // pred_check_branch
    %3 = sbr.rel (0) target = $region5
  $region4: #{tile.33} parent=0 // pred_region
    _
  $region5: #{tile.33} parent=0 // pred_fallthru
    _
  %v4 = vld [vmem:[%s0] ss:$0 sm:$0xff]
  %5 = vst [vmem:[%s1] sm:$0xf] %v4

// kernel: tile.34
$region0: #{tile.34}
  %s0 = inlined_call_operand.vmem [shape: f32[4,32], index: 0, kind: input, shape index: {}]
  %s1 = inlined_call_operand.vmem [shape: f32[1,128], index: 1, kind: output, shape index: {}]
  $region1: #{tile.34} parent=0
    #allocation0 [shape = 'u8[4096]{0}', space=vmem, size = 0x1000, scoped, tag = 'scoped mem for output reshape']
    #allocation1 [shape = 'u8[4096]{0}', space=vmem, size = 0x1000, scoped, tag = 'scoped mem for input reshape']
    %s3 = ssub.s32 16, 1
    %v4 = vld [vmem:[%s0] sm:%s3]
    %5 = vst [vmem:[#allocation1] sm:%s3] %v4
    %v6 = vld [vmem:[#allocation1] sm:$0x1]
    %vm7 = vcmask 261120
    %8 = vst.msk [vmem:[#allocation0] sm:$0x1] %vm7, %v6
    %s9 = scalar_lea.vmem [#allocation1], 3
    %v10 = vld [vmem:[%s9] sm:$0x1]
    %11 = vrot.lane.b32.xlu0 %v10, 96
    %v12 = vpop.permute.xlu0 %11
    %vm13 = vcmask 1048320
    %14 = vst.msk [vmem:[#allocation0] sm:$0x1] %vm13, %v12
    %s15 = scalar_lea.vmem [#allocation1], 2
    %v16 = vld [vmem:[%s15] sm:$0x1]
    %17 = vrot.lane.b32.xlu0 %v16, 64
    %v18 = vpop.permute.xlu0 %17
    %vm19 = vcmask 785920
    %20 = vst.msk [vmem:[#allocation0] sm:$0x1] %vm19, %v18
    %s21 = scalar_lea.vmem [#allocation1], 1
    %v22 = vld [vmem:[%s21] sm:$0x1]
    %23 = vrot.lane.b32.xlu0 %v22, 32
    %v24 = vpop.permute.xlu0 %23
    %vm25 = vcmask 523520
    %26 = vst.msk [vmem:[#allocation0] sm:$0x1] %vm25, %v24
    %s28 = ssub.s32 2, 1
    %v29 = vld [vmem:[#allocation0] sm:%s28]
    %s31 = ssub.s32 2, 1
    %32 = vst [vmem:[%s1] sm:%s31] %v29

// kernel: tile.43
$region0: #{tile.43}
  #allocation0 [shape = 's32[1]{0}', space=sflag, size = 0x4, scoped, tag = 'scoped memory for tile.43']
  %s0 = inlined_call_operand.vmem [shape: f32[32], index: 0, kind: input, shape index: {}]
  %s1 = inlined_call_operand.vmem [shape: f32[2,32], index: 1, kind: output, shape index: {}]
  // Predicated region
  $region2: #{tile.43} parent=0 // pred_check
    _
  $region3: #{tile.43} parent=0 // pred_check_branch
    %3 = sbr.rel (0) target = $region5
  $region4: #{tile.43} parent=0 // pred_region
    _
  $region5: #{tile.43} parent=0 // pred_fallthru
    _
  %v4 = vld [vmem:[%s0] ss:$0 sm:$0xff]
  %5 = vst [vmem:[%s1] sm:$0x3] %v4

// kernel: tile.44
$region0: #{tile.44}
  %s0 = inlined_call_operand.vmem [shape: f32[2,32], index: 0, kind: input, shape index: {}]
  %s1 = inlined_call_operand.vmem [shape: f32[1,64], index: 1, kind: output, shape index: {}]
  $region1: #{tile.44} parent=0
    #allocation0 [shape = 'u8[4096]{0}', space=vmem, size = 0x1000, scoped, tag = 'scoped mem for output reshape']
    #allocation1 [shape = 'u8[4096]{0}', space=vmem, size = 0x1000, scoped, tag = 'scoped mem for input reshape']
    %s3 = ssub.s32 4, 1
    %v4 = vld [vmem:[%s0] sm:%s3]
    %5 = vst [vmem:[#allocation1] sm:%s3] %v4
    %v6 = vld [vmem:[#allocation1] sm:$0x1]
    %vm7 = vcmask 261120
    %8 = vst.msk [vmem:[#allocation0] sm:$0x1] %vm7, %v6
    %s9 = scalar_lea.vmem [#allocation1], 1
    %v10 = vld [vmem:[%s9] sm:$0x1]
    %11 = vrot.lane.b32.xlu0 %v10, 32
    %v12 = vpop.permute.xlu0 %11
    %vm13 = vcmask 523520
    %14 = vst.msk [vmem:[#allocation0] sm:$0x1] %vm13, %v12
    %s16 = ssub.s32 2, 1
    %v17 = vld [vmem:[#allocation0] sm:%s16]
    %s19 = ssub.s32 2, 1
    %20 = vst [vmem:[%s1] sm:%s19] %v17

// kernel: ngram_wavenet_forward.1
$region0: #{ngram_wavenet_forward.1}
  #allocation0 [shape = 'u32[]', space=smem, size = 0x4, offset = 0x4, fixed_abs, tag = 'smem constant byte address 0x4 - core index']
  #allocation1 [shape = 'u32[72,128]{1,0:T(1,128)}', space=vmem, size = 0x9000, scoped, tag = 'internal scratch']
  %s0 = inlined_call_operand.vmem [shape: s32[48,8], index: 0, kind: input, shape index: {}]
  %s1 = inlined_call_operand.vmem [shape: f32[8,256], index: 1, kind: input, shape index: {}]
  %s2 = inlined_call_operand.vmem [shape: f32[1,256], index: 2, kind: input, shape index: {}]
  %s3 = inlined_call_operand.vmem [shape: f32[256,128], index: 3, kind: input, shape index: {}]
  %s4 = inlined_call_operand.vmem [shape: f32[128,128], index: 4, kind: input, shape index: {}]
  %s5 = inlined_call_operand.vmem [shape: f32[1,128], index: 5, kind: input, shape index: {}]
  %s6 = inlined_call_operand.vmem [shape: f32[1,128], index: 6, kind: input, shape index: {}]
  %s7 = inlined_call_operand.vmem [shape: f32[128,64], index: 7, kind: input, shape index: {}]
  %s8 = inlined_call_operand.vmem [shape: f32[64,64], index: 8, kind: input, shape index: {}]
  %s9 = inlined_call_operand.vmem [shape: f32[1,64], index: 9, kind: input, shape index: {}]
  %s10 = inlined_call_operand.vmem [shape: f32[1,64], index: 10, kind: input, shape index: {}]
  %s11 = inlined_call_operand.vmem [shape: f32[64,32], index: 11, kind: input, shape index: {}]
  %s12 = inlined_call_operand.vmem [shape: f32[32,32], index: 12, kind: input, shape index: {}]
  %s13 = inlined_call_operand.vmem [shape: f32[1,32], index: 13, kind: input, shape index: {}]
  %s14 = inlined_call_operand.vmem [shape: f32[1,32], index: 14, kind: input, shape index: {}]
  %s15 = inlined_call_operand.vmem [shape: f32[32,128], index: 15, kind: input, shape index: {}]
  %s16 = inlined_call_operand.vmem [shape: f32[1,128], index: 16, kind: input, shape index: {}]
  %s17 = inlined_call_operand.vmem [shape: f32[48,128], index: 17, kind: output, shape index: {}]
  %s18 = sld [smem:[#allocation0]]
  $region101: #{ngram_wavenet_forward.1} parent=0
    _
  %s20 = ssub.s32 1, %s18
  %s21 = scalar_select 0, %s20, %s18
  loop: start=0, step=1, limit=4
  $region2: #{ngram_wavenet_forward.1} parent=0 // loop_pre_header
    _
  $region3: #{ngram_wavenet_forward.1} parent=0 // loop_header
    %s23 = sphi 0, %s27
    %p24 = scmp.ge.s32.totalorder %s23, 4
    %s33 = sphi 0, %s35
    %s36 = sphi 0, %s33
    %s37 = sphi 0, %s36
    %s53 = sphi 0, %s37
    %s57 = sphi 0, %s57
    %s59 = sphi 0, %s57
    %s60 = sphi 0, %s59
    %s74 = sphi 0, %s60
    %s78 = sphi 0, %s78
    %s80 = sphi 0, %s78
    %s81 = sphi 0, %s80
    %s95 = sphi 0, %s81
    %s99 = sphi 0, %s99
    %s101 = sphi 0, %s99
    %s102 = sphi 0, %s101
    %s116 = sphi 0, %s102
    %s120 = sphi 0, %s120
    %s122 = sphi 0, %s120
    %s123 = sphi 0, %s122
    %s137 = sphi 0, %s123
    %s141 = sphi 0, %s141
    %s143 = sphi 0, %s141
    %s144 = sphi 0, %s143
    %s158 = sphi 0, %s144
    %s162 = sphi 0, %s162
    %s164 = sphi 0, %s162
    %s165 = sphi 0, %s164
    %s179 = sphi 0, %s165
    %s183 = sphi 0, %s183
    %s185 = sphi 0, %s183
    %s186 = sphi 0, %s185
    %s200 = sphi 0, %s186
    %s204 = sphi 0, %s204
    %s206 = sphi 0, %s204
    %s207 = sphi 0, %s206
    %s221 = sphi 0, %s207
    %s225 = sphi 0, %s225
    %s227 = sphi 0, %s225
    %s228 = sphi 0, %s227
    %s242 = sphi 0, %s228
    %s246 = sphi 0, %s246
    %s248 = sphi 0, %s246
    %s249 = sphi 0, %s248
    %s263 = sphi 0, %s249
    %s267 = sphi 0, %s267
    %s269 = sphi 0, %s267
    %s270 = sphi 0, %s269
    %s284 = sphi 0, %s270
    %s288 = sphi 0, %s288
    %s290 = sphi 0, %s288
    %s291 = sphi 0, %s290
    %s305 = sphi 0, %s291
    %s309 = sphi 0, %s309
    %s311 = sphi 0, %s309
    %s312 = sphi 0, %s311
    %s326 = sphi 0, %s312
    %s330 = sphi 0, %s330
    %s332 = sphi 0, %s330
    %s333 = sphi 0, %s332
    %s347 = sphi 0, %s333
    %s351 = sphi 0, %s351
    %s353 = sphi 0, %s351
    %s354 = sphi 0, %s353
    %s368 = sphi 0, %s354
    %s372 = sphi 0, %s372
    %s374 = sphi 0, %s372
    %s375 = sphi 0, %s374
    %s389 = sphi 0, %s375
    %s395 = sphi 0, %s397
    %s398 = sphi 0, %s395
    %s399 = sphi 0, %s398
    %s415 = sphi 0, %s399
  $region4: #{ngram_wavenet_forward.1} parent=0 // loop_header_branch
    %26 = sbr.rel (%p24) target = $region8
  $region5: #{ngram_wavenet_forward.1} parent=0 // loop_body
    %s28 = ssub.s32 %s23, 1
    %s29 = ssub.s32 %s23, 2
    %s30 = sadd.s32 %s23, 1
    %s31 = ssub.s32 %s23, %s30
    %p32 = scmp.eq.s32.totalorder %s31, 0
    %s34 = sadd.s32 %s33, 1
    %s35 = scalar_select %p32, %s33, %s34
    %p38 = pneg %p32
    %p39 = scmp.eq.s32.totalorder %s23, 1
    %p40 = por %p38, %p39
    %p41 = scmp.ne.s32.totalorder %s33, %s36
    %p42 = scmp.eq.s32.totalorder %s23, 0
    %p43 = por %p41, %p42
    %p44 = scmp.ne.s32.totalorder %s33, %s36
    %p45 = scmp.eq.s32.totalorder %s28, 1
    %p46 = por %p44, %p45
    %p47 = scmp.ne.s32.totalorder %s36, %s37
    %p48 = scmp.eq.s32.totalorder %s28, 0
    %p49 = por %p47, %p48
    %p50 = scmp.ne.s32.totalorder %s36, %s37
    %p51 = scmp.eq.s32.totalorder %s29, 1
    %p52 = por %p50, %p51
    %p54 = scmp.ne.s32.totalorder %s37, %s53
    %p55 = scmp.eq.s32.totalorder %s29, 0
    %p56 = por %p54, %p55
    %s58 = sadd.s32 %s57, 1
    %p61 = scmp.eq.s32.totalorder %s23, 1
    %p62 = scmp.ne.s32.totalorder %s57, %s59
    %p63 = scmp.eq.s32.totalorder %s23, 0
    %p64 = por %p62, %p63
    %p65 = scmp.ne.s32.totalorder %s57, %s59
    %p66 = scmp.eq.s32.totalorder %s28, 1
    %p67 = por %p65, %p66
    %p68 = scmp.ne.s32.totalorder %s59, %s60
    %p69 = scmp.eq.s32.totalorder %s28, 0
    %p70 = por %p68, %p69
    %p71 = scmp.ne.s32.totalorder %s59, %s60
    %p72 = scmp.eq.s32.totalorder %s29, 1
    %p73 = por %p71, %p72
    %p75 = scmp.ne.s32.totalorder %s60, %s74
    %p76 = scmp.eq.s32.totalorder %s29, 0
    %p77 = por %p75, %p76
    %s79 = sadd.s32 %s78, 1
    %p82 = scmp.eq.s32.totalorder %s23, 1
    %p83 = scmp.ne.s32.totalorder %s78, %s80
    %p84 = scmp.eq.s32.totalorder %s23, 0
    %p85 = por %p83, %p84
    %p86 = scmp.ne.s32.totalorder %s78, %s80
    %p87 = scmp.eq.s32.totalorder %s28, 1
    %p88 = por %p86, %p87
    %p89 = scmp.ne.s32.totalorder %s80, %s81
    %p90 = scmp.eq.s32.totalorder %s28, 0
    %p91 = por %p89, %p90
    %p92 = scmp.ne.s32.totalorder %s80, %s81
    %p93 = scmp.eq.s32.totalorder %s29, 1
    %p94 = por %p92, %p93
    %p96 = scmp.ne.s32.totalorder %s81, %s95
    %p97 = scmp.eq.s32.totalorder %s29, 0
    %p98 = por %p96, %p97
    %s100 = sadd.s32 %s99, 1
    %p103 = scmp.eq.s32.totalorder %s23, 1
    %p104 = scmp.ne.s32.totalorder %s99, %s101
    %p105 = scmp.eq.s32.totalorder %s23, 0
    %p106 = por %p104, %p105
    %p107 = scmp.ne.s32.totalorder %s99, %s101
    %p108 = scmp.eq.s32.totalorder %s28, 1
    %p109 = por %p107, %p108
    %p110 = scmp.ne.s32.totalorder %s101, %s102
    %p111 = scmp.eq.s32.totalorder %s28, 0
    %p112 = por %p110, %p111
    %p113 = scmp.ne.s32.totalorder %s101, %s102
    %p114 = scmp.eq.s32.totalorder %s29, 1
    %p115 = por %p113, %p114
    %p117 = scmp.ne.s32.totalorder %s102, %s116
    %p118 = scmp.eq.s32.totalorder %s29, 0
    %p119 = por %p117, %p118
    %s121 = sadd.s32 %s120, 1
    %p124 = scmp.eq.s32.totalorder %s23, 1
    %p125 = scmp.ne.s32.totalorder %s120, %s122
    %p126 = scmp.eq.s32.totalorder %s23, 0
    %p127 = por %p125, %p126
    %p128 = scmp.ne.s32.totalorder %s120, %s122
    %p129 = scmp.eq.s32.totalorder %s28, 1
    %p130 = por %p128, %p129
    %p131 = scmp.ne.s32.totalorder %s122, %s123
    %p132 = scmp.eq.s32.totalorder %s28, 0
    %p133 = por %p131, %p132
    %p134 = scmp.ne.s32.totalorder %s122, %s123
    %p135 = scmp.eq.s32.totalorder %s29, 1
    %p136 = por %p134, %p135
    %p138 = scmp.ne.s32.totalorder %s123, %s137
    %p139 = scmp.eq.s32.totalorder %s29, 0
    %p140 = por %p138, %p139
    %s142 = sadd.s32 %s141, 1
    %p145 = scmp.eq.s32.totalorder %s23, 1
    %p146 = scmp.ne.s32.totalorder %s141, %s143
    %p147 = scmp.eq.s32.totalorder %s23, 0
    %p148 = por %p146, %p147
    %p149 = scmp.ne.s32.totalorder %s141, %s143
    %p150 = scmp.eq.s32.totalorder %s28, 1
    %p151 = por %p149, %p150
    %p152 = scmp.ne.s32.totalorder %s143, %s144
    %p153 = scmp.eq.s32.totalorder %s28, 0
    %p154 = por %p152, %p153
    %p155 = scmp.ne.s32.totalorder %s143, %s144
    %p156 = scmp.eq.s32.totalorder %s29, 1
    %p157 = por %p155, %p156
    %p159 = scmp.ne.s32.totalorder %s144, %s158
    %p160 = scmp.eq.s32.totalorder %s29, 0
    %p161 = por %p159, %p160
    %s163 = sadd.s32 %s162, 1
    %p166 = scmp.eq.s32.totalorder %s23, 1
    %p167 = scmp.ne.s32.totalorder %s162, %s164
    %p168 = scmp.eq.s32.totalorder %s23, 0
    %p169 = por %p167, %p168
    %p170 = scmp.ne.s32.totalorder %s162, %s164
    %p171 = scmp.eq.s32.totalorder %s28, 1
    %p172 = por %p170, %p171
    %p173 = scmp.ne.s32.totalorder %s164, %s165
    %p174 = scmp.eq.s32.totalorder %s28, 0
    %p175 = por %p173, %p174
    %p176 = scmp.ne.s32.totalorder %s164, %s165
    %p177 = scmp.eq.s32.totalorder %s29, 1
    %p178 = por %p176, %p177
    %p180 = scmp.ne.s32.totalorder %s165, %s179
    %p181 = scmp.eq.s32.totalorder %s29, 0
    %p182 = por %p180, %p181
    %s184 = sadd.s32 %s183, 1
    %p187 = scmp.eq.s32.totalorder %s23, 1
    %p188 = scmp.ne.s32.totalorder %s183, %s185
    %p189 = scmp.eq.s32.totalorder %s23, 0
    %p190 = por %p188, %p189
    %p191 = scmp.ne.s32.totalorder %s183, %s185
    %p192 = scmp.eq.s32.totalorder %s28, 1
    %p193 = por %p191, %p192
    %p194 = scmp.ne.s32.totalorder %s185, %s186
    %p195 = scmp.eq.s32.totalorder %s28, 0
    %p196 = por %p194, %p195
    %p197 = scmp.ne.s32.totalorder %s185, %s186
    %p198 = scmp.eq.s32.totalorder %s29, 1
    %p199 = por %p197, %p198
    %p201 = scmp.ne.s32.totalorder %s186, %s200
    %p202 = scmp.eq.s32.totalorder %s29, 0
    %p203 = por %p201, %p202
    %s205 = sadd.s32 %s204, 1
    %p208 = scmp.eq.s32.totalorder %s23, 1
    %p209 = scmp.ne.s32.totalorder %s204, %s206
    %p210 = scmp.eq.s32.totalorder %s23, 0
    %p211 = por %p209, %p210
    %p212 = scmp.ne.s32.totalorder %s204, %s206
    %p213 = scmp.eq.s32.totalorder %s28, 1
    %p214 = por %p212, %p213
    %p215 = scmp.ne.s32.totalorder %s206, %s207
    %p216 = scmp.eq.s32.totalorder %s28, 0
    %p217 = por %p215, %p216
    %p218 = scmp.ne.s32.totalorder %s206, %s207
    %p219 = scmp.eq.s32.totalorder %s29, 1
    %p220 = por %p218, %p219
    %p222 = scmp.ne.s32.totalorder %s207, %s221
    %p223 = scmp.eq.s32.totalorder %s29, 0
    %p224 = por %p222, %p223
    %s226 = sadd.s32 %s225, 1
    %p229 = scmp.eq.s32.totalorder %s23, 1
    %p230 = scmp.ne.s32.totalorder %s225, %s227
    %p231 = scmp.eq.s32.totalorder %s23, 0
    %p232 = por %p230, %p231
    %p233 = scmp.ne.s32.totalorder %s225, %s227
    %p234 = scmp.eq.s32.totalorder %s28, 1
    %p235 = por %p233, %p234
    %p236 = scmp.ne.s32.totalorder %s227, %s228
    %p237 = scmp.eq.s32.totalorder %s28, 0
    %p238 = por %p236, %p237
    %p239 = scmp.ne.s32.totalorder %s227, %s228
    %p240 = scmp.eq.s32.totalorder %s29, 1
    %p241 = por %p239, %p240
    %p243 = scmp.ne.s32.totalorder %s228, %s242
    %p244 = scmp.eq.s32.totalorder %s29, 0
    %p245 = por %p243, %p244
    %s247 = sadd.s32 %s246, 1
    %p250 = scmp.eq.s32.totalorder %s23, 1
    %p251 = scmp.ne.s32.totalorder %s246, %s248
    %p252 = scmp.eq.s32.totalorder %s23, 0
    %p253 = por %p251, %p252
    %p254 = scmp.ne.s32.totalorder %s246, %s248
    %p255 = scmp.eq.s32.totalorder %s28, 1
    %p256 = por %p254, %p255
    %p257 = scmp.ne.s32.totalorder %s248, %s249
    %p258 = scmp.eq.s32.totalorder %s28, 0
    %p259 = por %p257, %p258
    %p260 = scmp.ne.s32.totalorder %s248, %s249
    %p261 = scmp.eq.s32.totalorder %s29, 1
    %p262 = por %p260, %p261
    %p264 = scmp.ne.s32.totalorder %s249, %s263
    %p265 = scmp.eq.s32.totalorder %s29, 0
    %p266 = por %p264, %p265
    %s268 = sadd.s32 %s267, 1
    %p271 = scmp.eq.s32.totalorder %s23, 1
    %p272 = scmp.ne.s32.totalorder %s267, %s269
    %p273 = scmp.eq.s32.totalorder %s23, 0
    %p274 = por %p272, %p273
    %p275 = scmp.ne.s32.totalorder %s267, %s269
    %p276 = scmp.eq.s32.totalorder %s28, 1
    %p277 = por %p275, %p276
    %p278 = scmp.ne.s32.totalorder %s269, %s270
    %p279 = scmp.eq.s32.totalorder %s28, 0
    %p280 = por %p278, %p279
    %p281 = scmp.ne.s32.totalorder %s269, %s270
    %p282 = scmp.eq.s32.totalorder %s29, 1
    %p283 = por %p281, %p282
    %p285 = scmp.ne.s32.totalorder %s270, %s284
    %p286 = scmp.eq.s32.totalorder %s29, 0
    %p287 = por %p285, %p286
    %s289 = sadd.s32 %s288, 1
    %p292 = scmp.eq.s32.totalorder %s23, 1
    %p293 = scmp.ne.s32.totalorder %s288, %s290
    %p294 = scmp.eq.s32.totalorder %s23, 0
    %p295 = por %p293, %p294
    %p296 = scmp.ne.s32.totalorder %s288, %s290
    %p297 = scmp.eq.s32.totalorder %s28, 1
    %p298 = por %p296, %p297
    %p299 = scmp.ne.s32.totalorder %s290, %s291
    %p300 = scmp.eq.s32.totalorder %s28, 0
    %p301 = por %p299, %p300
    %p302 = scmp.ne.s32.totalorder %s290, %s291
    %p303 = scmp.eq.s32.totalorder %s29, 1
    %p304 = por %p302, %p303
    %p306 = scmp.ne.s32.totalorder %s291, %s305
    %p307 = scmp.eq.s32.totalorder %s29, 0
    %p308 = por %p306, %p307
    %s310 = sadd.s32 %s309, 1
    %p313 = scmp.eq.s32.totalorder %s23, 1
    %p314 = scmp.ne.s32.totalorder %s309, %s311
    %p315 = scmp.eq.s32.totalorder %s23, 0
    %p316 = por %p314, %p315
    %p317 = scmp.ne.s32.totalorder %s309, %s311
    %p318 = scmp.eq.s32.totalorder %s28, 1
    %p319 = por %p317, %p318
    %p320 = scmp.ne.s32.totalorder %s311, %s312
    %p321 = scmp.eq.s32.totalorder %s28, 0
    %p322 = por %p320, %p321
    %p323 = scmp.ne.s32.totalorder %s311, %s312
    %p324 = scmp.eq.s32.totalorder %s29, 1
    %p325 = por %p323, %p324
    %p327 = scmp.ne.s32.totalorder %s312, %s326
    %p328 = scmp.eq.s32.totalorder %s29, 0
    %p329 = por %p327, %p328
    %s331 = sadd.s32 %s330, 1
    %p334 = scmp.eq.s32.totalorder %s23, 1
    %p335 = scmp.ne.s32.totalorder %s330, %s332
    %p336 = scmp.eq.s32.totalorder %s23, 0
    %p337 = por %p335, %p336
    %p338 = scmp.ne.s32.totalorder %s330, %s332
    %p339 = scmp.eq.s32.totalorder %s28, 1
    %p340 = por %p338, %p339
    %p341 = scmp.ne.s32.totalorder %s332, %s333
    %p342 = scmp.eq.s32.totalorder %s28, 0
    %p343 = por %p341, %p342
    %p344 = scmp.ne.s32.totalorder %s332, %s333
    %p345 = scmp.eq.s32.totalorder %s29, 1
    %p346 = por %p344, %p345
    %p348 = scmp.ne.s32.totalorder %s333, %s347
    %p349 = scmp.eq.s32.totalorder %s29, 0
    %p350 = por %p348, %p349
    %s352 = sadd.s32 %s351, 1
    %p355 = scmp.eq.s32.totalorder %s23, 1
    %p356 = scmp.ne.s32.totalorder %s351, %s353
    %p357 = scmp.eq.s32.totalorder %s23, 0
    %p358 = por %p356, %p357
    %p359 = scmp.ne.s32.totalorder %s351, %s353
    %p360 = scmp.eq.s32.totalorder %s28, 1
    %p361 = por %p359, %p360
    %p362 = scmp.ne.s32.totalorder %s353, %s354
    %p363 = scmp.eq.s32.totalorder %s28, 0
    %p364 = por %p362, %p363
    %p365 = scmp.ne.s32.totalorder %s353, %s354
    %p366 = scmp.eq.s32.totalorder %s29, 1
    %p367 = por %p365, %p366
    %p369 = scmp.ne.s32.totalorder %s354, %s368
    %p370 = scmp.eq.s32.totalorder %s29, 0
    %p371 = por %p369, %p370
    %s373 = sadd.s32 %s372, 1
    %p376 = scmp.eq.s32.totalorder %s23, 1
    %p377 = scmp.ne.s32.totalorder %s372, %s374
    %p378 = scmp.eq.s32.totalorder %s23, 0
    %p379 = por %p377, %p378
    %p380 = scmp.ne.s32.totalorder %s372, %s374
    %p381 = scmp.eq.s32.totalorder %s28, 1
    %p382 = por %p380, %p381
    %p383 = scmp.ne.s32.totalorder %s374, %s375
    %p384 = scmp.eq.s32.totalorder %s28, 0
    %p385 = por %p383, %p384
    %p386 = scmp.ne.s32.totalorder %s374, %s375
    %p387 = scmp.eq.s32.totalorder %s29, 1
    %p388 = por %p386, %p387
    %p390 = scmp.ne.s32.totalorder %s375, %s389
    %p391 = scmp.eq.s32.totalorder %s29, 0
    %p392 = por %p390, %p391
    %s393 = ssub.s32 %s23, %s30
    %p394 = scmp.eq.s32.totalorder %s393, 0
    %s396 = sadd.s32 %s395, 1
    %s397 = scalar_select %p394, %s395, %s396
    %p400 = pneg %p394
    %p401 = scmp.eq.s32.totalorder %s23, 1
    %p402 = por %p400, %p401
    %p403 = scmp.ne.s32.totalorder %s395, %s398
    %p404 = scmp.eq.s32.totalorder %s23, 0
    %p405 = por %p403, %p404
    %p406 = scmp.ne.s32.totalorder %s395, %s398
    %p407 = scmp.eq.s32.totalorder %s28, 1
    %p408 = por %p406, %p407
    %p409 = scmp.ne.s32.totalorder %s398, %s399
    %p410 = scmp.eq.s32.totalorder %s28, 0
    %p411 = por %p409, %p410
    %p412 = scmp.ne.s32.totalorder %s398, %s399
    %p413 = scmp.eq.s32.totalorder %s29, 1
    %p414 = por %p412, %p413
    %p416 = scmp.ne.s32.totalorder %s399, %s415
    %p417 = scmp.eq.s32.totalorder %s29, 0
    %p418 = por %p416, %p417
    %p419 = scmp.le.s32.totalorder 1, %s23
    %p420 = scmp.lt.s32.totalorder %s23, 3
    %p421 = pnand %p419, %p420
    %p422 = pneg %p421
    // Predicated region
    $region9: #{ngram_wavenet_forward.1} parent=5 // pred_check
      _
    $region10: #{ngram_wavenet_forward.1} parent=5 // pred_check_branch
      %424 = sbr.rel (%p421) target = $region12
    $region11: #{ngram_wavenet_forward.1} parent=5 // pred_region
      %s425 = ssub.s32 %s23, 1
      // Predicated region
      $region13: #{ngram_wavenet_forward.1} parent=11 // pred_check
        %p426 = pneg %p70
      $region14: #{ngram_wavenet_forward.1} parent=11 // pred_check_branch
        %428 = sbr.rel (%p426) target = $region16
      $region15: #{ngram_wavenet_forward.1} parent=11 // pred_region
        _
      $region16: #{ngram_wavenet_forward.1} parent=11 // pred_fallthru
        _
      // Predicated region
      $region17: #{ngram_wavenet_forward.1} parent=11 // pred_check
        %p429 = pneg %p91
      $region18: #{ngram_wavenet_forward.1} parent=11 // pred_check_branch
        %431 = sbr.rel (%p429) target = $region20
      $region19: #{ngram_wavenet_forward.1} parent=11 // pred_region
        _
      $region20: #{ngram_wavenet_forward.1} parent=11 // pred_fallthru
        _
      // Predicated region
      $region21: #{ngram_wavenet_forward.1} parent=11 // pred_check
        %p432 = pneg %p112
      $region22: #{ngram_wavenet_forward.1} parent=11 // pred_check_branch
        %434 = sbr.rel (%p432) target = $region24
      $region23: #{ngram_wavenet_forward.1} parent=11 // pred_region
        _
      $region24: #{ngram_wavenet_forward.1} parent=11 // pred_fallthru
        _
      // Predicated region
      $region25: #{ngram_wavenet_forward.1} parent=11 // pred_check
        %p435 = pneg %p133
      $region26: #{ngram_wavenet_forward.1} parent=11 // pred_check_branch
        %437 = sbr.rel (%p435) target = $region28
      $region27: #{ngram_wavenet_forward.1} parent=11 // pred_region
        _
      $region28: #{ngram_wavenet_forward.1} parent=11 // pred_fallthru
        _
      // Predicated region
      $region29: #{ngram_wavenet_forward.1} parent=11 // pred_check
        %p438 = pneg %p154
      $region30: #{ngram_wavenet_forward.1} parent=11 // pred_check_branch
        %440 = sbr.rel (%p438) target = $region32
      $region31: #{ngram_wavenet_forward.1} parent=11 // pred_region
        _
      $region32: #{ngram_wavenet_forward.1} parent=11 // pred_fallthru
        _
      // Predicated region
      $region33: #{ngram_wavenet_forward.1} parent=11 // pred_check
        %p441 = pneg %p175
      $region34: #{ngram_wavenet_forward.1} parent=11 // pred_check_branch
        %443 = sbr.rel (%p441) target = $region36
      $region35: #{ngram_wavenet_forward.1} parent=11 // pred_region
        _
      $region36: #{ngram_wavenet_forward.1} parent=11 // pred_fallthru
        _
      // Predicated region
      $region37: #{ngram_wavenet_forward.1} parent=11 // pred_check
        %p444 = pneg %p196
      $region38: #{ngram_wavenet_forward.1} parent=11 // pred_check_branch
        %446 = sbr.rel (%p444) target = $region40
      $region39: #{ngram_wavenet_forward.1} parent=11 // pred_region
        _
      $region40: #{ngram_wavenet_forward.1} parent=11 // pred_fallthru
        _
      // Predicated region
      $region41: #{ngram_wavenet_forward.1} parent=11 // pred_check
        %p447 = pneg %p217
      $region42: #{ngram_wavenet_forward.1} parent=11 // pred_check_branch
        %449 = sbr.rel (%p447) target = $region44
      $region43: #{ngram_wavenet_forward.1} parent=11 // pred_region
        _
      $region44: #{ngram_wavenet_forward.1} parent=11 // pred_fallthru
        _
      // Predicated region
      $region45: #{ngram_wavenet_forward.1} parent=11 // pred_check
        %p450 = pneg %p238
      $region46: #{ngram_wavenet_forward.1} parent=11 // pred_check_branch
        %452 = sbr.rel (%p450) target = $region48
      $region47: #{ngram_wavenet_forward.1} parent=11 // pred_region
        _
      $region48: #{ngram_wavenet_forward.1} parent=11 // pred_fallthru
        _
      // Predicated region
      $region49: #{ngram_wavenet_forward.1} parent=11 // pred_check
        %p453 = pneg %p259
      $region50: #{ngram_wavenet_forward.1} parent=11 // pred_check_branch
        %455 = sbr.rel (%p453) target = $region52
      $region51: #{ngram_wavenet_forward.1} parent=11 // pred_region
        _
      $region52: #{ngram_wavenet_forward.1} parent=11 // pred_fallthru
        _
      // Predicated region
      $region53: #{ngram_wavenet_forward.1} parent=11 // pred_check
        %p456 = pneg %p280
      $region54: #{ngram_wavenet_forward.1} parent=11 // pred_check_branch
        %458 = sbr.rel (%p456) target = $region56
      $region55: #{ngram_wavenet_forward.1} parent=11 // pred_region
        _
      $region56: #{ngram_wavenet_forward.1} parent=11 // pred_fallthru
        _
      // Predicated region
      $region57: #{ngram_wavenet_forward.1} parent=11 // pred_check
        %p459 = pneg %p301
      $region58: #{ngram_wavenet_forward.1} parent=11 // pred_check_branch
        %461 = sbr.rel (%p459) target = $region60
      $region59: #{ngram_wavenet_forward.1} parent=11 // pred_region
        _
      $region60: #{ngram_wavenet_forward.1} parent=11 // pred_fallthru
        _
      // Predicated region
      $region61: #{ngram_wavenet_forward.1} parent=11 // pred_check
        %p462 = pneg %p322
      $region62: #{ngram_wavenet_forward.1} parent=11 // pred_check_branch
        %464 = sbr.rel (%p462) target = $region64
      $region63: #{ngram_wavenet_forward.1} parent=11 // pred_region
        _
      $region64: #{ngram_wavenet_forward.1} parent=11 // pred_fallthru
        _
      // Predicated region
      $region65: #{ngram_wavenet_forward.1} parent=11 // pred_check
        %p465 = pneg %p343
      $region66: #{ngram_wavenet_forward.1} parent=11 // pred_check_branch
        %467 = sbr.rel (%p465) target = $region68
      $region67: #{ngram_wavenet_forward.1} parent=11 // pred_region
        _
      $region68: #{ngram_wavenet_forward.1} parent=11 // pred_fallthru
        _
      // Predicated region
      $region69: #{ngram_wavenet_forward.1} parent=11 // pred_check
        %p468 = pneg %p364
      $region70: #{ngram_wavenet_forward.1} parent=11 // pred_check_branch
        %470 = sbr.rel (%p468) target = $region72
      $region71: #{ngram_wavenet_forward.1} parent=11 // pred_region
        _
      $region72: #{ngram_wavenet_forward.1} parent=11 // pred_fallthru
        _
      // Predicated region
      $region73: #{ngram_wavenet_forward.1} parent=11 // pred_check
        %p471 = pneg %p385
      $region74: #{ngram_wavenet_forward.1} parent=11 // pred_check_branch
        %473 = sbr.rel (%p471) target = $region76
      $region75: #{ngram_wavenet_forward.1} parent=11 // pred_region
        _
      $region76: #{ngram_wavenet_forward.1} parent=11 // pred_fallthru
        _
    $region12: #{ngram_wavenet_forward.1} parent=5 // pred_fallthru
      _
    %p474 = scmp.lt.s32.totalorder %s23, 2
    // Predicated region
    $region77: #{ngram_wavenet_forward.1} parent=5 // pred_check
      %p475 = pneg %p474
    $region78: #{ngram_wavenet_forward.1} parent=5 // pred_check_branch
      %477 = sbr.rel (%p475) target = $region80
    $region79: #{ngram_wavenet_forward.1} parent=5 // pred_region
      // Predicated region
      $region81: #{ngram_wavenet_forward.1} parent=79 // pred_check
        %p478 = pneg %p43
      $region82: #{ngram_wavenet_forward.1} parent=79 // pred_check_branch
        %480 = sbr.rel (%p478) target = $region84
      $region83: #{ngram_wavenet_forward.1} parent=79 // pred_region
        %s481 = smul.u32 3, %s23
        %p482 = scmp.lt.s32.totalorder %s481, 5
        %s483 = scalar_select %p482, %s481, 5
        %s484 = smul.addr %s483, 8
        %s485 = scalar_lea.vmem %s0, %s484
        %s486 = smul.u32 3, %s23
      $region84: #{ngram_wavenet_forward.1} parent=79 // pred_fallthru
        _
    $region80: #{ngram_wavenet_forward.1} parent=5 // pred_fallthru
      _
    %p487 = scmp.le.s32.totalorder 1, %s23
    %p488 = scmp.lt.s32.totalorder %s23, 3
    %p489 = pnand %p487, %p488
    %p490 = pneg %p489
    // Predicated region
    $region85: #{ngram_wavenet_forward.1} parent=5 // pred_check
      _
    $region86: #{ngram_wavenet_forward.1} parent=5 // pred_check_branch
      %492 = sbr.rel (%p489) target = $region88
    $region87: #{ngram_wavenet_forward.1} parent=5 // pred_region
      %s493 = ssub.s32 %s23, 1
      %s494 = smul.u32 3, %s28
      %p495 = scmp.lt.s32.totalorder %s494, 5
      %s496 = scalar_select %p495, %s494, 5
      %s497 = smul.addr %s496, 8
      %s498 = scalar_lea.vmem %s0, %s497
      %p499 = pneg %p49
      %p500 = pneg %p46
      %p501 = pneg %p70
      %p502 = pneg %p67
      %p503 = pneg %p91
      %p504 = pneg %p88
      %p505 = pneg %p112
      %p506 = pneg %p109
      %p507 = pneg %p133
      %p508 = pneg %p130
      %p509 = pneg %p154
      %p510 = pneg %p151
      %p511 = pneg %p175
      %p512 = pneg %p172
      %p513 = pneg %p196
      %p514 = pneg %p193
      %p515 = pneg %p217
      %p516 = pneg %p214
      %p517 = pneg %p238
      %p518 = pneg %p235
      %p519 = pneg %p259
      %p520 = pneg %p256
      %p521 = pneg %p280
      %p522 = pneg %p277
      %p523 = pneg %p301
      %p524 = pneg %p298
      %p525 = pneg %p322
      %p526 = pneg %p319
      %p527 = pneg %p343
      %p528 = pneg %p340
      %p529 = pneg %p364
      %p530 = pneg %p361
      %p531 = pneg %p385
      %p532 = pneg %p382
      %p533 = pneg %p411
      %p534 = pneg %p408
      %s535 = smul.u32 3, %s28
      %p536 = scmp.lt.s32.totalorder %s535, 5
      %s537 = scalar_select %p536, %s535, 5
      %s538 = smul.addr %s537, 8
      %s539 = scalar_lea.vmem %s17, %s538
      %s540 = smul.u32 3, %s28
      %p541 = scmp.lt.s32.totalorder %s540, 5
      %s542 = scalar_select %p541, %s540, 5
      %s543 = smul.addr %s542, 8
      %s544 = scalar_lea.vmem %s0, %s543
      %s545 = smul.u32 3, %s28
      %s546 = smul.u32 3, %s28
      %p547 = scmp.lt.s32.totalorder %s546, 5
      %s548 = scalar_select %p547, %s546, 5
      %s549 = smul.addr %s548, 8
      %s550 = scalar_lea.vmem %s17, %s549
      %s551 = smul.u32 3, %s28
      %v552 = vld [vmem:[%s544] sm:$0xff]
      %v553 = vld [vmem:[%s544 + $0x8] sm:$0xff]
      %v554 = vld [vmem:[%s544 + $0x10] sm:$0xff]
      %v555 = vcvt.s32.f32 %v552
      %v556 = vcvt.s32.f32 %v553
      %v557 = vcvt.s32.f32 %v554
      %v558 = vld [vmem:[%s1] sm:$0xff]
      %v559 = vld [vmem:[%s1 + $0x8] sm:$0xff]
      %vm560 = vcmask 64512
      %v562 = vsel %vm560, %v555, 0
      %v565 = vsel %vm560, %v556, 0
      %v568 = vsel %vm560, %v557, 0
      %570 = vmatpush.msra.mxu0 0.0
      %571 = vmatpush.msra.mxu0 0.0
      %572 = vmatpush.msra.mxu0 0.0
      %573 = vmatpush.msra.mxu0 0.0
      %574 = vmatpush.msra.mxu0 0.0
      %575 = vmatpush.msra.mxu0 0.0
      %576 = vmatpush.msra.mxu0 0.0
      %577 = vmatpush.msra.mxu0 0.0
      %578 = vmatpush.msra.mxu0 0.0
      %579 = vmatpush.msra.mxu0 0.0
      %580 = vmatpush.msra.mxu0 0.0
      %581 = vmatpush.msra.mxu0 0.0
      %582 = vmatpush.msra.mxu0 0.0
      %583 = vmatpush.msra.mxu0 0.0
      %584 = vmatpush.msra.mxu0 0.0
      %585 = vmatpush.msra.mxu0 %v558
      %586 = vmatmul.f32.gmra.mxu0 %v562
      %v587 = vpop.f32.mrf.mxu0
      %v588 = vadd.f32 0.0, %v587
      %589 = vmatmul.f32.gmra.mxu0 %v565
      %v590 = vpop.f32.mrf.mxu0
      %v591 = vadd.f32 0.0, %v590
      %592 = vmatmul.f32.gmra.mxu0 %v568
      %v593 = vpop.f32.mrf.mxu0
      %v594 = vadd.f32 0.0, %v593
      %595 = vdwg.mxu0
      %596 = vmatpush.msra.mxu0 0.0
      %597 = vmatpush.msra.mxu0 0.0
      %598 = vmatpush.msra.mxu0 0.0
      %599 = vmatpush.msra.mxu0 0.0
      %600 = vmatpush.msra.mxu0 0.0
      %601 = vmatpush.msra.mxu0 0.0
      %602 = vmatpush.msra.mxu0 0.0
      %603 = vmatpush.msra.mxu0 0.0
      %604 = vmatpush.msra.mxu0 0.0
      %605 = vmatpush.msra.mxu0 0.0
      %606 = vmatpush.msra.mxu0 0.0
      %607 = vmatpush.msra.mxu0 0.0
      %608 = vmatpush.msra.mxu0 0.0
      %609 = vmatpush.msra.mxu0 0.0
      %610 = vmatpush.msra.mxu0 0.0
      %611 = vmatpush.msra.mxu0 %v559
      %612 = vmatmul.f32.gmra.mxu0 %v562
      %v613 = vpop.f32.mrf.mxu0
      %v614 = vadd.f32 0.0, %v613
      %615 = vmatmul.f32.gmra.mxu0 %v565
      %v616 = vpop.f32.mrf.mxu0
      %v617 = vadd.f32 0.0, %v616
      %618 = vmatmul.f32.gmra.mxu0 %v568
      %v619 = vpop.f32.mrf.mxu0
      %v620 = vadd.f32 0.0, %v619
      %621 = vdwg.mxu0
      %v622 = vld [vmem:[%s2] sm:$0x3]
      %v624 = vperm.slane %v622, 0
      %v625 = vperm.slane %v622, 1
      %v628 = vsub.f32 %v588, %v624
      %v629 = vsub.f32 %v614, %v625
      %v630 = vsub.f32 %v591, %v624
      %v631 = vsub.f32 %v617, %v625
      %v632 = vsub.f32 %v594, %v624
      %v633 = vsub.f32 %v620, %v625
      %v634 = vand.u32 2147483647, %v628
      %v635 = vand.u32 2147483647, %v629
      %v636 = vand.u32 2147483647, %v630
      %v637 = vand.u32 2147483647, %v631
      %v638 = vand.u32 2147483647, %v632
      %v639 = vand.u32 2147483647, %v633
      %vm640 = vcmp.lt.f32.partialorder %v634, 0.5
      %vm641 = vcmp.lt.f32.partialorder %v635, 0.5
      %vm642 = vcmp.lt.f32.partialorder %v636, 0.5
      %vm643 = vcmp.lt.f32.partialorder %v637, 0.5
      %vm644 = vcmp.lt.f32.partialorder %v638, 0.5
      %vm645 = vcmp.lt.f32.partialorder %v639, 0.5
      %v646 = vsel %vm640, 1, 0
      %v647 = vsel %vm641, 1, 0
      %v648 = vsel %vm642, 1, 0
      %v649 = vsel %vm643, 1, 0
      %v650 = vsel %vm644, 1, 0
      %v651 = vsel %vm645, 1, 0
      %v652 = vcvt.s32.f32 %v646
      %v653 = vcvt.s32.f32 %v647
      %v654 = vcvt.s32.f32 %v648
      %v655 = vcvt.s32.f32 %v649
      %v656 = vcvt.s32.f32 %v650
      %v657 = vcvt.s32.f32 %v651
      %v658 = vld [vmem:[%s3] sm:$0xff]
      %v659 = vld [vmem:[%s3 + $0x8] sm:$0xff]
      %v660 = vld [vmem:[%s3 + $0x10] sm:$0xff]
      %v661 = vld [vmem:[%s3 + $0x18] sm:$0xff]
      %v662 = vld [vmem:[%s3 + $0x20] sm:$0xff]
      %v663 = vld [vmem:[%s3 + $0x28] sm:$0xff]
      %v664 = vld [vmem:[%s3 + $0x30] sm:$0xff]
      %v665 = vld [vmem:[%s3 + $0x38] sm:$0xff]
      %v666 = vld [vmem:[%s3 + $0x40] sm:$0xff]
      %v667 = vld [vmem:[%s3 + $0x48] sm:$0xff]
      %v668 = vld [vmem:[%s3 + $0x50] sm:$0xff]
      %v669 = vld [vmem:[%s3 + $0x58] sm:$0xff]
      %v670 = vld [vmem:[%s3 + $0x60] sm:$0xff]
      %v671 = vld [vmem:[%s3 + $0x68] sm:$0xff]
      %v672 = vld [vmem:[%s3 + $0x70] sm:$0xff]
      %v673 = vld [vmem:[%s3 + $0x78] sm:$0xff]
      %v674 = vld [vmem:[%s3 + $0x80] sm:$0xff]
      %v675 = vld [vmem:[%s3 + $0x88] sm:$0xff]
      %v676 = vld [vmem:[%s3 + $0x90] sm:$0xff]
      %v677 = vld [vmem:[%s3 + $0x98] sm:$0xff]
      %v678 = vld [vmem:[%s3 + $0xa0] sm:$0xff]
      %v679 = vld [vmem:[%s3 + $0xa8] sm:$0xff]
      %v680 = vld [vmem:[%s3 + $0xb0] sm:$0xff]
      %v681 = vld [vmem:[%s3 + $0xb8] sm:$0xff]
      %v682 = vld [vmem:[%s3 + $0xc0] sm:$0xff]
      %v683 = vld [vmem:[%s3 + $0xc8] sm:$0xff]
      %v684 = vld [vmem:[%s3 + $0xd0] sm:$0xff]
      %v685 = vld [vmem:[%s3 + $0xd8] sm:$0xff]
      %v686 = vld [vmem:[%s3 + $0xe0] sm:$0xff]
      %v687 = vld [vmem:[%s3 + $0xe8] sm:$0xff]
      %v688 = vld [vmem:[%s3 + $0xf0] sm:$0xff]
      %v689 = vld [vmem:[%s3 + $0xf8] sm:$0xff]
      %690 = vmatpush.msra.mxu0 %v673
      %691 = vmatpush.msra.mxu0 %v672
      %692 = vmatpush.msra.mxu0 %v671
      %693 = vmatpush.msra.mxu0 %v670
      %694 = vmatpush.msra.mxu0 %v669
      %695 = vmatpush.msra.mxu0 %v668
      %696 = vmatpush.msra.mxu0 %v667
      %697 = vmatpush.msra.mxu0 %v666
      %698 = vmatpush.msra.mxu0 %v665
      %699 = vmatpush.msra.mxu0 %v664
      %700 = vmatpush.msra.mxu0 %v663
      %701 = vmatpush.msra.mxu0 %v662
      %702 = vmatpush.msra.mxu0 %v661
      %703 = vmatpush.msra.mxu0 %v660
      %704 = vmatpush.msra.mxu0 %v659
      %705 = vmatpush.msra.mxu0 %v658
      %706 = vmatmul.f32.gmra.mxu0 %v652
      %v707 = vpop.f32.mrf.mxu0
      %v708 = vadd.f32 0.0, %v707
      %709 = vmatmul.f32.gmra.mxu0 %v654
      %v710 = vpop.f32.mrf.mxu0
      %v711 = vadd.f32 0.0, %v710
      %712 = vmatmul.f32.gmra.mxu0 %v656
      %v713 = vpop.f32.mrf.mxu0
      %v714 = vadd.f32 0.0, %v713
      %715 = vdwg.mxu0
      %716 = vmatpush.msra.mxu0 %v689
      %717 = vmatpush.msra.mxu0 %v688
      %718 = vmatpush.msra.mxu0 %v687
      %719 = vmatpush.msra.mxu0 %v686
      %720 = vmatpush.msra.mxu0 %v685
      %721 = vmatpush.msra.mxu0 %v684
      %722 = vmatpush.msra.mxu0 %v683
      %723 = vmatpush.msra.mxu0 %v682
      %724 = vmatpush.msra.mxu0 %v681
      %725 = vmatpush.msra.mxu0 %v680
      %726 = vmatpush.msra.mxu0 %v679
      %727 = vmatpush.msra.mxu0 %v678
      %728 = vmatpush.msra.mxu0 %v677
      %729 = vmatpush.msra.mxu0 %v676
      %730 = vmatpush.msra.mxu0 %v675
      %731 = vmatpush.msra.mxu0 %v674
      %732 = vmatmul.f32.gmra.mxu0 %v653
      %v733 = vpop.f32.mrf.mxu0
      %v734 = vadd.f32 %v708, %v733
      %735 = vmatmul.f32.gmra.mxu0 %v655
      %v736 = vpop.f32.mrf.mxu0
      %v737 = vadd.f32 %v711, %v736
      %738 = vmatmul.f32.gmra.mxu0 %v657
      %v739 = vpop.f32.mrf.mxu0
      %v740 = vadd.f32 %v714, %v739
      %741 = vdwg.mxu0
      %v742 = vld [vmem:[%s4] sm:$0xff]
      %v743 = vld [vmem:[%s4 + $0x8] sm:$0xff]
      %v744 = vld [vmem:[%s4 + $0x10] sm:$0xff]
      %v745 = vld [vmem:[%s4 + $0x18] sm:$0xff]
      %v746 = vld [vmem:[%s4 + $0x20] sm:$0xff]
      %v747 = vld [vmem:[%s4 + $0x28] sm:$0xff]
      %v748 = vld [vmem:[%s4 + $0x30] sm:$0xff]
      %v749 = vld [vmem:[%s4 + $0x38] sm:$0xff]
      %v750 = vld [vmem:[%s4 + $0x40] sm:$0xff]
      %v751 = vld [vmem:[%s4 + $0x48] sm:$0xff]
      %v752 = vld [vmem:[%s4 + $0x50] sm:$0xff]
      %v753 = vld [vmem:[%s4 + $0x58] sm:$0xff]
      %v754 = vld [vmem:[%s4 + $0x60] sm:$0xff]
      %v755 = vld [vmem:[%s4 + $0x68] sm:$0xff]
      %v756 = vld [vmem:[%s4 + $0x70] sm:$0xff]
      %v757 = vld [vmem:[%s4 + $0x78] sm:$0xff]
      %758 = vmatpush.msra.mxu0 %v757
      %759 = vmatpush.msra.mxu0 %v756
      %760 = vmatpush.msra.mxu0 %v755
      %761 = vmatpush.msra.mxu0 %v754
      %762 = vmatpush.msra.mxu0 %v753
      %763 = vmatpush.msra.mxu0 %v752
      %764 = vmatpush.msra.mxu0 %v751
      %765 = vmatpush.msra.mxu0 %v750
      %766 = vmatpush.msra.mxu0 %v749
      %767 = vmatpush.msra.mxu0 %v748
      %768 = vmatpush.msra.mxu0 %v747
      %769 = vmatpush.msra.mxu0 %v746
      %770 = vmatpush.msra.mxu0 %v745
      %771 = vmatpush.msra.mxu0 %v744
      %772 = vmatpush.msra.mxu0 %v743
      %773 = vmatpush.msra.mxu0 %v742
      %774 = vmatmul.f32.gmra.mxu0 %v734
      %v775 = vpop.f32.mrf.mxu0
      %v776 = vadd.f32 0.0, %v775
      %777 = vmatmul.f32.gmra.mxu0 %v737
      %v778 = vpop.f32.mrf.mxu0
      %v779 = vadd.f32 0.0, %v778
      %780 = vmatmul.f32.gmra.mxu0 %v740
      %v781 = vpop.f32.mrf.mxu0
      %v782 = vadd.f32 0.0, %v781
      %783 = vdwg.mxu0
      %v784 = vmul.f32 %v734, %v734
      %v785 = vmul.f32 %v737, %v737
      %v786 = vmul.f32 %v740, %v740
      %787 = vmatpush.msra.mxu0 %v757
      %788 = vmatpush.msra.mxu0 %v756
      %789 = vmatpush.msra.mxu0 %v755
      %790 = vmatpush.msra.mxu0 %v754
      %791 = vmatpush.msra.mxu0 %v753
      %792 = vmatpush.msra.mxu0 %v752
      %793 = vmatpush.msra.mxu0 %v751
      %794 = vmatpush.msra.mxu0 %v750
      %795 = vmatpush.msra.mxu0 %v749
      %796 = vmatpush.msra.mxu0 %v748
      %797 = vmatpush.msra.mxu0 %v747
      %798 = vmatpush.msra.mxu0 %v746
      %799 = vmatpush.msra.mxu0 %v745
      %800 = vmatpush.msra.mxu0 %v744
      %801 = vmatpush.msra.mxu0 %v743
      %802 = vmatpush.msra.mxu0 %v742
      %803 = vmatmul.f32.gmra.mxu0 %v784
      %v804 = vpop.f32.mrf.mxu0
      %v805 = vadd.f32 0.0, %v804
      %806 = vmatmul.f32.gmra.mxu0 %v785
      %v807 = vpop.f32.mrf.mxu0
      %v808 = vadd.f32 0.0, %v807
      %809 = vmatmul.f32.gmra.mxu0 %v786
      %v810 = vpop.f32.mrf.mxu0
      %v811 = vadd.f32 0.0, %v810
      %812 = vdwg.mxu0
      %v813 = vmul.f32 %v776, %v776
      %v814 = vmul.f32 %v779, %v779
      %v815 = vmul.f32 %v782, %v782
      %v816 = vsub.f32 %v805, %v813
      %v817 = vsub.f32 %v808, %v814
      %v818 = vsub.f32 %v811, %v815
      %v819 = vmax.f32 %v816, 0.0
      %v820 = vmax.f32 %v817, 0.0
      %v821 = vmax.f32 %v818, 0.0
      %v822 = vadd.f32 %v819, 1e-05
      %v823 = vadd.f32 %v820, 1e-05
      %v824 = vadd.f32 %v821, 1e-05
      %v825 = vrsqrt.pop %v822
      %v826 = vmul.f32 %v825, %v822
      %v827 = vmul.f32 %v826, %v825
      %v828 = vmul.f32 0.5, %v827
      %v829 = vsub.f32 1.5, %v828
      %v830 = vmul.f32 %v825, %v829
      %vm831 = vweird.f32 %v822
      %vm832 = vweird.f32 %v825
      %vm833 = vmor %vm831, %vm832
      %v834 = vsel %vm833, %v825, %v830
      %v835 = vrsqrt.pop %v823
      %v836 = vmul.f32 %v835, %v823
      %v837 = vmul.f32 %v836, %v835
      %v838 = vmul.f32 0.5, %v837
      %v839 = vsub.f32 1.5, %v838
      %v840 = vmul.f32 %v835, %v839
      %vm841 = vweird.f32 %v823
      %vm842 = vweird.f32 %v835
      %vm843 = vmor %vm841, %vm842
      %v844 = vsel %vm843, %v835, %v840
      %v845 = vrsqrt.pop %v824
      %v846 = vmul.f32 %v845, %v824
      %v847 = vmul.f32 %v846, %v845
      %v848 = vmul.f32 0.5, %v847
      %v849 = vsub.f32 1.5, %v848
      %v850 = vmul.f32 %v845, %v849
      %vm851 = vweird.f32 %v824
      %vm852 = vweird.f32 %v845
      %vm853 = vmor %vm851, %vm852
      %v854 = vsel %vm853, %v845, %v850
      %v855 = vsub.f32 %v734, %v776
      %v856 = vsub.f32 %v737, %v779
      %v857 = vsub.f32 %v740, %v782
      %v858 = vmul.f32 %v855, %v834
      %v859 = vmul.f32 %v856, %v844
      %v860 = vmul.f32 %v857, %v854
      %v861 = vld [vmem:[%s5] sm:$0x1]
      %v863 = vperm.slane %v861, 0
      %v865 = vmul.f32 %v858, %v863
      %v866 = vmul.f32 %v859, %v863
      %v867 = vmul.f32 %v860, %v863
      %v868 = vld [vmem:[%s6] sm:$0x1]
      %v870 = vperm.slane %v868, 0
      %v872 = vadd.f32 %v865, %v870
      %v873 = vadd.f32 %v866, %v870
      %v874 = vadd.f32 %v867, %v870
      %v875 = vtanh.pop %v872
      %v876 = vtanh.pop %v873
      %v877 = vtanh.pop %v874
      %v878 = vld [vmem:[%s7] sm:$0xff]
      %v879 = vld [vmem:[%s7 + $0x8] sm:$0xff]
      %v880 = vld [vmem:[%s7 + $0x10] sm:$0xff]
      %v881 = vld [vmem:[%s7 + $0x18] sm:$0xff]
      %v882 = vld [vmem:[%s7 + $0x20] sm:$0xff]
      %v883 = vld [vmem:[%s7 + $0x28] sm:$0xff]
      %v884 = vld [vmem:[%s7 + $0x30] sm:$0xff]
      %v885 = vld [vmem:[%s7 + $0x38] sm:$0xff]
      %v886 = vld [vmem:[%s7 + $0x40] sm:$0xff]
      %v887 = vld [vmem:[%s7 + $0x48] sm:$0xff]
      %v888 = vld [vmem:[%s7 + $0x50] sm:$0xff]
      %v889 = vld [vmem:[%s7 + $0x58] sm:$0xff]
      %v890 = vld [vmem:[%s7 + $0x60] sm:$0xff]
      %v891 = vld [vmem:[%s7 + $0x68] sm:$0xff]
      %v892 = vld [vmem:[%s7 + $0x70] sm:$0xff]
      %v893 = vld [vmem:[%s7 + $0x78] sm:$0xff]
      %894 = vmatpush.msra.mxu0 %v893
      %895 = vmatpush.msra.mxu0 %v892
      %896 = vmatpush.msra.mxu0 %v891
      %897 = vmatpush.msra.mxu0 %v890
      %898 = vmatpush.msra.mxu0 %v889
      %899 = vmatpush.msra.mxu0 %v888
      %900 = vmatpush.msra.mxu0 %v887
      %901 = vmatpush.msra.mxu0 %v886
      %902 = vmatpush.msra.mxu0 %v885
      %903 = vmatpush.msra.mxu0 %v884
      %904 = vmatpush.msra.mxu0 %v883
      %905 = vmatpush.msra.mxu0 %v882
      %906 = vmatpush.msra.mxu0 %v881
      %907 = vmatpush.msra.mxu0 %v880
      %908 = vmatpush.msra.mxu0 %v879
      %909 = vmatpush.msra.mxu0 %v878
      %910 = vmatmul.f32.gmra.mxu0 %v875
      %v911 = vpop.f32.mrf.mxu0
      %v912 = vadd.f32 0.0, %v911
      %913 = vmatmul.f32.gmra.mxu0 %v876
      %v914 = vpop.f32.mrf.mxu0
      %v915 = vadd.f32 0.0, %v914
      %916 = vmatmul.f32.gmra.mxu0 %v877
      %v917 = vpop.f32.mrf.mxu0
      %v918 = vadd.f32 0.0, %v917
      %919 = vdwg.mxu0
      %v920 = vld [vmem:[%s8] sm:$0xff]
      %v921 = vld [vmem:[%s8 + $0x8] sm:$0xff]
      %v922 = vld [vmem:[%s8 + $0x10] sm:$0xff]
      %v923 = vld [vmem:[%s8 + $0x18] sm:$0xff]
      %v924 = vld [vmem:[%s8 + $0x20] sm:$0xff]
      %v925 = vld [vmem:[%s8 + $0x28] sm:$0xff]
      %v926 = vld [vmem:[%s8 + $0x30] sm:$0xff]
      %v927 = vld [vmem:[%s8 + $0x38] sm:$0xff]
      %vm928 = vcmask 523264
      %v930 = vsel %vm928, %v912, 0
      %v933 = vsel %vm928, %v915, 0
      %v936 = vsel %vm928, %v918, 0
      %938 = vmatpush.msra.mxu0 0.0
      %939 = vmatpush.msra.mxu0 0.0
      %940 = vmatpush.msra.mxu0 0.0
      %941 = vmatpush.msra.mxu0 0.0
      %942 = vmatpush.msra.mxu0 0.0
      %943 = vmatpush.msra.mxu0 0.0
      %944 = vmatpush.msra.mxu0 0.0
      %945 = vmatpush.msra.mxu0 0.0
      %946 = vmatpush.msra.mxu0 %v927
      %947 = vmatpush.msra.mxu0 %v926
      %948 = vmatpush.msra.mxu0 %v925
      %949 = vmatpush.msra.mxu0 %v924
      %950 = vmatpush.msra.mxu0 %v923
      %951 = vmatpush.msra.mxu0 %v922
      %952 = vmatpush.msra.mxu0 %v921
      %953 = vmatpush.msra.mxu0 %v920
      %954 = vmatmul.f32.gmra.mxu0 %v930
      %v955 = vpop.f32.mrf.mxu0
      %v956 = vadd.f32 0.0, %v955
      %957 = vmatmul.f32.gmra.mxu0 %v933
      %v958 = vpop.f32.mrf.mxu0
      %v959 = vadd.f32 0.0, %v958
      %960 = vmatmul.f32.gmra.mxu0 %v936
      %v961 = vpop.f32.mrf.mxu0
      %v962 = vadd.f32 0.0, %v961
      %963 = vdwg.mxu0
      %v964 = vmul.f32 %v912, %v912
      %v965 = vmul.f32 %v915, %v915
      %v966 = vmul.f32 %v918, %v918
      %v968 = vsel %vm928, %v964, 0
      %v971 = vsel %vm928, %v965, 0
      %v974 = vsel %vm928, %v966, 0
      %976 = vmatpush.msra.mxu0 0.0
      %977 = vmatpush.msra.mxu0 0.0
      %978 = vmatpush.msra.mxu0 0.0
      %979 = vmatpush.msra.mxu0 0.0
      %980 = vmatpush.msra.mxu0 0.0
      %981 = vmatpush.msra.mxu0 0.0
      %982 = vmatpush.msra.mxu0 0.0
      %983 = vmatpush.msra.mxu0 0.0
      %984 = vmatpush.msra.mxu0 %v927
      %985 = vmatpush.msra.mxu0 %v926
      %986 = vmatpush.msra.mxu0 %v925
      %987 = vmatpush.msra.mxu0 %v924
      %988 = vmatpush.msra.mxu0 %v923
      %989 = vmatpush.msra.mxu0 %v922
      %990 = vmatpush.msra.mxu0 %v921
      %991 = vmatpush.msra.mxu0 %v920
      %992 = vmatmul.f32.gmra.mxu0 %v968
      %v993 = vpop.f32.mrf.mxu0
      %v994 = vadd.f32 0.0, %v993
      %995 = vmatmul.f32.gmra.mxu0 %v971
      %v996 = vpop.f32.mrf.mxu0
      %v997 = vadd.f32 0.0, %v996
      %998 = vmatmul.f32.gmra.mxu0 %v974
      %v999 = vpop.f32.mrf.mxu0
      %v1000 = vadd.f32 0.0, %v999
      %1001 = vdwg.mxu0
      %v1002 = vmul.f32 %v956, %v956
      %v1003 = vmul.f32 %v959, %v959
      %v1004 = vmul.f32 %v962, %v962
      %v1005 = vsub.f32 %v994, %v1002
      %v1006 = vsub.f32 %v997, %v1003
      %v1007 = vsub.f32 %v1000, %v1004
      %v1008 = vmax.f32 %v1005, 0.0
      %v1009 = vmax.f32 %v1006, 0.0
      %v1010 = vmax.f32 %v1007, 0.0
      %v1011 = vadd.f32 %v1008, 1e-05
      %v1012 = vadd.f32 %v1009, 1e-05
      %v1013 = vadd.f32 %v1010, 1e-05
      %v1014 = vrsqrt.pop %v1011
      %v1015 = vmul.f32 %v1014, %v1011
      %v1016 = vmul.f32 %v1015, %v1014
      %v1017 = vmul.f32 0.5, %v1016
      %v1018 = vsub.f32 1.5, %v1017
      %v1019 = vmul.f32 %v1014, %v1018
      %vm1020 = vweird.f32 %v1011
      %vm1021 = vweird.f32 %v1014
      %vm1022 = vmor %vm1020, %vm1021
      %v1023 = vsel %vm1022, %v1014, %v1019
      %v1024 = vrsqrt.pop %v1012
      %v1025 = vmul.f32 %v1024, %v1012
      %v1026 = vmul.f32 %v1025, %v1024
      %v1027 = vmul.f32 0.5, %v1026
      %v1028 = vsub.f32 1.5, %v1027
      %v1029 = vmul.f32 %v1024, %v1028
      %vm1030 = vweird.f32 %v1012
      %vm1031 = vweird.f32 %v1024
      %vm1032 = vmor %vm1030, %vm1031
      %v1033 = vsel %vm1032, %v1024, %v1029
      %v1034 = vrsqrt.pop %v1013
      %v1035 = vmul.f32 %v1034, %v1013
      %v1036 = vmul.f32 %v1035, %v1034
      %v1037 = vmul.f32 0.5, %v1036
      %v1038 = vsub.f32 1.5, %v1037
      %v1039 = vmul.f32 %v1034, %v1038
      %vm1040 = vweird.f32 %v1013
      %vm1041 = vweird.f32 %v1034
      %vm1042 = vmor %vm1040, %vm1041
      %v1043 = vsel %vm1042, %v1034, %v1039
      %v1044 = vsub.f32 %v912, %v956
      %v1045 = vsub.f32 %v915, %v959
      %v1046 = vsub.f32 %v918, %v962
      %v1047 = vmul.f32 %v1044, %v1023
      %v1048 = vmul.f32 %v1045, %v1033
      %v1049 = vmul.f32 %v1046, %v1043
      %v1050 = vld [vmem:[%s9] sm:$0x1]
      %v1052 = vperm.slane %v1050, 0
      %v1054 = vmul.f32 %v1047, %v1052
      %v1055 = vmul.f32 %v1048, %v1052
      %v1056 = vmul.f32 %v1049, %v1052
      %v1057 = vld [vmem:[%s10] sm:$0x1]
      %v1059 = vperm.slane %v1057, 0
      %v1061 = vadd.f32 %v1054, %v1059
      %v1062 = vadd.f32 %v1055, %v1059
      %v1063 = vadd.f32 %v1056, %v1059
      %v1064 = vtanh.pop %v1061
      %v1065 = vtanh.pop %v1062
      %v1066 = vtanh.pop %v1063
      %v1067 = vld [vmem:[%s11] sm:$0xff]
      %v1068 = vld [vmem:[%s11 + $0x8] sm:$0xff]
      %v1069 = vld [vmem:[%s11 + $0x10] sm:$0xff]
      %v1070 = vld [vmem:[%s11 + $0x18] sm:$0xff]
      %v1071 = vld [vmem:[%s11 + $0x20] sm:$0xff]
      %v1072 = vld [vmem:[%s11 + $0x28] sm:$0xff]
      %v1073 = vld [vmem:[%s11 + $0x30] sm:$0xff]
      %v1074 = vld [vmem:[%s11 + $0x38] sm:$0xff]
      %v1076 = vsel %vm928, %v1064, 0
      %v1079 = vsel %vm928, %v1065, 0
      %v1082 = vsel %vm928, %v1066, 0
      %1084 = vmatpush.msra.mxu0 0.0
      %1085 = vmatpush.msra.mxu0 0.0
      %1086 = vmatpush.msra.mxu0 0.0
      %1087 = vmatpush.msra.mxu0 0.0
      %1088 = vmatpush.msra.mxu0 0.0
      %1089 = vmatpush.msra.mxu0 0.0
      %1090 = vmatpush.msra.mxu0 0.0
      %1091 = vmatpush.msra.mxu0 0.0
      %1092 = vmatpush.msra.mxu0 %v1074
      %1093 = vmatpush.msra.mxu0 %v1073
      %1094 = vmatpush.msra.mxu0 %v1072
      %1095 = vmatpush.msra.mxu0 %v1071
      %1096 = vmatpush.msra.mxu0 %v1070
      %1097 = vmatpush.msra.mxu0 %v1069
      %1098 = vmatpush.msra.mxu0 %v1068
      %1099 = vmatpush.msra.mxu0 %v1067
      %1100 = vmatmul.f32.gmra.mxu0 %v1076
      %v1101 = vpop.f32.mrf.mxu0
      %v1102 = vadd.f32 0.0, %v1101
      %1103 = vmatmul.f32.gmra.mxu0 %v1079
      %v1104 = vpop.f32.mrf.mxu0
      %v1105 = vadd.f32 0.0, %v1104
      %1106 = vmatmul.f32.gmra.mxu0 %v1082
      %v1107 = vpop.f32.mrf.mxu0
      %v1108 = vadd.f32 0.0, %v1107
      %1109 = vdwg.mxu0
      %v1110 = vld [vmem:[%s12] sm:$0xff]
      %v1111 = vld [vmem:[%s12 + $0x8] sm:$0xff]
      %v1112 = vld [vmem:[%s12 + $0x10] sm:$0xff]
      %v1113 = vld [vmem:[%s12 + $0x18] sm:$0xff]
      %vm1114 = vcmask 261120
      %v1116 = vsel %vm1114, %v1102, 0
      %v1119 = vsel %vm1114, %v1105, 0
      %v1122 = vsel %vm1114, %v1108, 0
      %1124 = vmatpush.msra.mxu0 0.0
      %1125 = vmatpush.msra.mxu0 0.0
      %1126 = vmatpush.msra.mxu0 0.0
      %1127 = vmatpush.msra.mxu0 0.0
      %1128 = vmatpush.msra.mxu0 0.0
      %1129 = vmatpush.msra.mxu0 0.0
      %1130 = vmatpush.msra.mxu0 0.0
      %1131 = vmatpush.msra.mxu0 0.0
      %1132 = vmatpush.msra.mxu0 0.0
      %1133 = vmatpush.msra.mxu0 0.0
      %1134 = vmatpush.msra.mxu0 0.0
      %1135 = vmatpush.msra.mxu0 0.0
      %1136 = vmatpush.msra.mxu0 %v1113
      %1137 = vmatpush.msra.mxu0 %v1112
      %1138 = vmatpush.msra.mxu0 %v1111
      %1139 = vmatpush.msra.mxu0 %v1110
      %1140 = vmatmul.f32.gmra.mxu0 %v1116
      %v1141 = vpop.f32.mrf.mxu0
      %v1142 = vadd.f32 0.0, %v1141
      %1143 = vmatmul.f32.gmra.mxu0 %v1119
      %v1144 = vpop.f32.mrf.mxu0
      %v1145 = vadd.f32 0.0, %v1144
      %1146 = vmatmul.f32.gmra.mxu0 %v1122
      %v1147 = vpop.f32.mrf.mxu0
      %v1148 = vadd.f32 0.0, %v1147
      %1149 = vdwg.mxu0
      %v1150 = vmul.f32 %v1102, %v1102
      %v1151 = vmul.f32 %v1105, %v1105
      %v1152 = vmul.f32 %v1108, %v1108
      %v1154 = vsel %vm1114, %v1150, 0
      %v1157 = vsel %vm1114, %v1151, 0
      %v1160 = vsel %vm1114, %v1152, 0
      %1162 = vmatpush.msra.mxu0 0.0
      %1163 = vmatpush.msra.mxu0 0.0
      %1164 = vmatpush.msra.mxu0 0.0
      %1165 = vmatpush.msra.mxu0 0.0
      %1166 = vmatpush.msra.mxu0 0.0
      %1167 = vmatpush.msra.mxu0 0.0
      %1168 = vmatpush.msra.mxu0 0.0
      %1169 = vmatpush.msra.mxu0 0.0
      %1170 = vmatpush.msra.mxu0 0.0
      %1171 = vmatpush.msra.mxu0 0.0
      %1172 = vmatpush.msra.mxu0 0.0
      %1173 = vmatpush.msra.mxu0 0.0
      %1174 = vmatpush.msra.mxu0 %v1113
      %1175 = vmatpush.msra.mxu0 %v1112
      %1176 = vmatpush.msra.mxu0 %v1111
      %1177 = vmatpush.msra.mxu0 %v1110
      %1178 = vmatmul.f32.gmra.mxu0 %v1154
      %v1179 = vpop.f32.mrf.mxu0
      %v1180 = vadd.f32 0.0, %v1179
      %1181 = vmatmul.f32.gmra.mxu0 %v1157
      %v1182 = vpop.f32.mrf.mxu0
      %v1183 = vadd.f32 0.0, %v1182
      %1184 = vmatmul.f32.gmra.mxu0 %v1160
      %v1185 = vpop.f32.mrf.mxu0
      %v1186 = vadd.f32 0.0, %v1185
      %1187 = vdwg.mxu0
      %v1188 = vmul.f32 %v1142, %v1142
      %v1189 = vmul.f32 %v1145, %v1145
      %v1190 = vmul.f32 %v1148, %v1148
      %v1191 = vsub.f32 %v1180, %v1188
      %v1192 = vsub.f32 %v1183, %v1189
      %v1193 = vsub.f32 %v1186, %v1190
      %v1194 = vmax.f32 %v1191, 0.0
      %v1195 = vmax.f32 %v1192, 0.0
      %v1196 = vmax.f32 %v1193, 0.0
      %v1197 = vadd.f32 %v1194, 1e-05
      %v1198 = vadd.f32 %v1195, 1e-05
      %v1199 = vadd.f32 %v1196, 1e-05
      %v1200 = vrsqrt.pop %v1197
      %v1201 = vmul.f32 %v1200, %v1197
      %v1202 = vmul.f32 %v1201, %v1200
      %v1203 = vmul.f32 0.5, %v1202
      %v1204 = vsub.f32 1.5, %v1203
      %v1205 = vmul.f32 %v1200, %v1204
      %vm1206 = vweird.f32 %v1197
      %vm1207 = vweird.f32 %v1200
      %vm1208 = vmor %vm1206, %vm1207
      %v1209 = vsel %vm1208, %v1200, %v1205
      %v1210 = vrsqrt.pop %v1198
      %v1211 = vmul.f32 %v1210, %v1198
      %v1212 = vmul.f32 %v1211, %v1210
      %v1213 = vmul.f32 0.5, %v1212
      %v1214 = vsub.f32 1.5, %v1213
      %v1215 = vmul.f32 %v1210, %v1214
      %vm1216 = vweird.f32 %v1198
      %vm1217 = vweird.f32 %v1210
      %vm1218 = vmor %vm1216, %vm1217
      %v1219 = vsel %vm1218, %v1210, %v1215
      %v1220 = vrsqrt.pop %v1199
      %v1221 = vmul.f32 %v1220, %v1199
      %v1222 = vmul.f32 %v1221, %v1220
      %v1223 = vmul.f32 0.5, %v1222
      %v1224 = vsub.f32 1.5, %v1223
      %v1225 = vmul.f32 %v1220, %v1224
      %vm1226 = vweird.f32 %v1199
      %vm1227 = vweird.f32 %v1220
      %vm1228 = vmor %vm1226, %vm1227
      %v1229 = vsel %vm1228, %v1220, %v1225
      %v1230 = vsub.f32 %v1102, %v1142
      %v1231 = vsub.f32 %v1105, %v1145
      %v1232 = vsub.f32 %v1108, %v1148
      %v1233 = vmul.f32 %v1230, %v1209
      %v1234 = vmul.f32 %v1231, %v1219
      %v1235 = vmul.f32 %v1232, %v1229
      %v1236 = vld [vmem:[%s13] sm:$0x1]
      %v1238 = vperm.slane %v1236, 0
      %v1240 = vmul.f32 %v1233, %v1238
      %v1241 = vmul.f32 %v1234, %v1238
      %v1242 = vmul.f32 %v1235, %v1238
      %v1243 = vld [vmem:[%s14] sm:$0x1]
      %v1245 = vperm.slane %v1243, 0
      %v1247 = vadd.f32 %v1240, %v1245
      %v1248 = vadd.f32 %v1241, %v1245
      %v1249 = vadd.f32 %v1242, %v1245
      %v1250 = vtanh.pop %v1247
      %v1251 = vtanh.pop %v1248
      %v1252 = vtanh.pop %v1249
      %v1253 = vld [vmem:[%s15] sm:$0xff]
      %v1254 = vld [vmem:[%s15 + $0x8] sm:$0xff]
      %v1255 = vld [vmem:[%s15 + $0x10] sm:$0xff]
      %v1256 = vld [vmem:[%s15 + $0x18] sm:$0xff]
      %v1257 = vld [vmem:[%s16] sm:$0x1]
      %v1259 = vperm.slane %v1257, 0
      %v1262 = vsel %vm1114, %v1250, 0
      %v1265 = vsel %vm1114, %v1251, 0
      %v1268 = vsel %vm1114, %v1252, 0
      %1270 = vmatpush.msra.mxu0 0.0
      %1271 = vmatpush.msra.mxu0 0.0
      %1272 = vmatpush.msra.mxu0 0.0
      %1273 = vmatpush.msra.mxu0 0.0
      %1274 = vmatpush.msra.mxu0 0.0
      %1275 = vmatpush.msra.mxu0 0.0
      %1276 = vmatpush.msra.mxu0 0.0
      %1277 = vmatpush.msra.mxu0 0.0
      %1278 = vmatpush.msra.mxu0 0.0
      %1279 = vmatpush.msra.mxu0 0.0
      %1280 = vmatpush.msra.mxu0 0.0
      %1281 = vmatpush.msra.mxu0 0.0
      %1282 = vmatpush.msra.mxu0 %v1256
      %1283 = vmatpush.msra.mxu0 %v1255
      %1284 = vmatpush.msra.mxu0 %v1254
      %1285 = vmatpush.msra.mxu0 %v1253
      %1286 = vmatmul.f32.gmra.mxu0 %v1262
      %v1287 = vpop.f32.mrf.mxu0
      %v1288 = vadd.f32 %v1259, %v1287
      %1289 = vmatmul.f32.gmra.mxu0 %v1265
      %v1290 = vpop.f32.mrf.mxu0
      %v1291 = vadd.f32 %v1259, %v1290
      %1292 = vmatmul.f32.gmra.mxu0 %v1268
      %v1293 = vpop.f32.mrf.mxu0
      %v1294 = vadd.f32 %v1259, %v1293
      %1295 = vdwg.mxu0
      %1296 = vst [vmem:[%s550] sm:$0xff] %v1288
      %1297 = vst [vmem:[%s550 + $0x8] sm:$0xff] %v1291
      %1298 = vst [vmem:[%s550 + $0x10] sm:$0xff] %v1294
      %s1299 = smul.u32 3, %s28
      %p1300 = scmp.lt.s32.totalorder %s1299, 5
      %s1301 = scalar_select %p1300, %s1299, 5
      %s1302 = smul.addr %s1301, 8
      %s1303 = scalar_lea.vmem %s17, %s1302
      // Predicated region
      $region89: #{ngram_wavenet_forward.1} parent=87 // pred_check
        %p1304 = pneg %p408
      $region90: #{ngram_wavenet_forward.1} parent=87 // pred_check_branch
        %1306 = sbr.rel (%p1304) target = $region92
      $region91: #{ngram_wavenet_forward.1} parent=87 // pred_region
        %s1307 = smul.u32 3, %s28
      $region92: #{ngram_wavenet_forward.1} parent=87 // pred_fallthru
        _
    $region88: #{ngram_wavenet_forward.1} parent=5 // pred_fallthru
      _
    %p1308 = scmp.le.s32.totalorder 2, %s23
    // Predicated region
    $region93: #{ngram_wavenet_forward.1} parent=5 // pred_check
      %p1309 = pneg %p1308
    $region94: #{ngram_wavenet_forward.1} parent=5 // pred_check_branch
      %1311 = sbr.rel (%p1309) target = $region96
    $region95: #{ngram_wavenet_forward.1} parent=5 // pred_region
      %s1312 = ssub.s32 %s23, 2
      // Predicated region
      $region97: #{ngram_wavenet_forward.1} parent=95 // pred_check
        %p1313 = pneg %p414
      $region98: #{ngram_wavenet_forward.1} parent=95 // pred_check_branch
        %1315 = sbr.rel (%p1313) target = $region100
      $region99: #{ngram_wavenet_forward.1} parent=95 // pred_region
        %s1316 = smul.u32 3, %s29
        %p1317 = scmp.lt.s32.totalorder %s1316, 5
        %s1318 = scalar_select %p1317, %s1316, 5
        %s1319 = smul.addr %s1318, 8
        %s1320 = scalar_lea.vmem %s17, %s1319
      $region100: #{ngram_wavenet_forward.1} parent=95 // pred_fallthru
        _
    $region96: #{ngram_wavenet_forward.1} parent=5 // pred_fallthru
      _
  $region6: #{ngram_wavenet_forward.1} parent=0 // loop_footer
    %s27 = sadd.s32 1, %s23
  $region7: #{ngram_wavenet_forward.1} parent=0 // loop_footer_branch
    %22 = sbr.rel target = $region3
  $region8: #{ngram_wavenet_forward.1} parent=0 // loop_exit
    _

</llo_original>
